<compile_context>
chip_gen: v7x
topology: tpu7x:2x2x1
jax: 0.10.0
libtpu: 0.0.40
codegen_flags: <defaults>
</compile_context>

<pallas_src>
import functools

import jax
import jax.numpy as jnp
from jax import lax
from jax.experimental import pallas as pl
from jax.experimental.pallas import tpu as pltpu


def _round_up(n, m):
    return ((n + m - 1) // m) * m


def _vmem_ceiling_bytes():
    # Generation-aware scoped-VMEM ceiling with headroom (128 MiB v5e/v6e,
    # 64 MiB per core on v7x).  Falls back to the conservative v7x value.
    try:
        cap = pltpu.get_tpu_info().vmem_capacity_bytes
    except Exception:
        cap = 64 << 20
    return int(cap * 7 // 8)


# ------------- Fused kernel: chunked input projection + recurrence + FC -------------
def _fused_lstm_fc_kernel(
    x_ref, wih0_ref, wih_ref, whh_ref, b_ref, fcw_ref, fcb_ref,   # inputs
    out_ref,                                                      # output
    seq_sc, pg_sc, h_sc, c_sc,                                    # VMEM scratch
    *, hidden, chunk, seq_len, mask_tail,
):
    """Grid = (n_chunks, num_layers), both axes sequential ('arbitrary').

    x_ref   : (Tc, Bp, I) bf16   time-major input chunk (fetched once per chunk)
    wih0_ref: (I, 4H)     bf16   layer-0 W_ih^T (resident)
    wih_ref : (L, H, 4H)  bf16   W_ih^T for layers > 0 (resident; slot 0 unused)
    whh_ref : (L, H, 4H)  bf16   W_hh^T per layer (resident)
    b_ref   : (L, 1, 4H)  f32    b_ih + b_hh per layer (resident)
    fcw_ref : (H, Cp)     bf16   FC weight^T (lane-padded)
    fcb_ref : (1, Cp)     f32    FC bias (lane-padded)
    out_ref : (Bp, Cp)    f32    logits (written on the final grid step)
    seq_sc  : (Tc, Bp, H) bf16   inter-layer chunk sequence (lives in VMEM)
    pg_sc   : (Tc, Bp, 4H) f32   chunk pre-gates of the current layer
    h_sc/c_sc : (L, Bp, H) f32   per-layer recurrent state carried across chunks
    """
    H, Tc = hidden, chunk
    c = pl.program_id(0)            # time-chunk index (outer, sequential)
    l = pl.program_id(1)            # layer index (inner, sequential)
    n_chunks = pl.num_programs(0)
    n_layers = pl.num_programs(1)

    # Zero-init the (constant-index) output block once, for robustness.
    @pl.when((c == 0) & (l == 0))
    def _():
        out_ref[...] = jnp.zeros(out_ref.shape, out_ref.dtype)

    # Fresh (h, c) state for this layer at the first time chunk.
    @pl.when(c == 0)
    def _():
        zeros = jnp.zeros(h_sc.shape[1:], h_sc.dtype)
        h_sc[l] = zeros
        c_sc[l] = zeros

    # ---- chunk input projection: ONE matmul per (chunk, layer), bias added once ----
    @pl.when(l == 0)
    def _():
        tc, bp, isz = x_ref.shape
        x2 = x_ref[...].reshape(tc * bp, isz)                       # bf16
        pg = jnp.dot(x2, wih0_ref[...], preferred_element_type=jnp.float32)
        pg_sc[...] = pg.reshape(pg_sc.shape) + b_ref[l]

    @pl.when(l > 0)
    def _():
        tc, bp, hh = seq_sc.shape
        x2 = seq_sc[...].reshape(tc * bp, hh)                       # bf16 (prev layer)
        pg = jnp.dot(x2, wih_ref[l], preferred_element_type=jnp.float32)
        pg_sc[...] = pg.reshape(pg_sc.shape) + b_ref[l]

    # ---- serial recurrence over the Tc timesteps of this chunk ----
    w_hh = whh_ref[l]                                               # (H, 4H) bf16
    keep_seq = l < n_layers - 1                                     # last layer's seq unused

    def step(t, carry):
        h, cell = carry
        g = pg_sc[t] + jnp.dot(h.astype(jnp.bfloat16), w_hh,
                               preferred_element_type=jnp.float32)  # (Bp, 4H) i,f,g,o
        # NOTE: with H=32 these gate slices are sub-128-lane extracts; for
        # production sizes keep H a multiple of 128 so each gate is lane-aligned.
        i_g = jax.nn.sigmoid(g[:, 0:H])
        f_g = jax.nn.sigmoid(g[:, H:2 * H])
        g_g = jnp.tanh(g[:, 2 * H:3 * H])
        o_g = jax.nn.sigmoid(g[:, 3 * H:4 * H])
        cell_new = f_g * cell + i_g * g_g
        h_new = o_g * jnp.tanh(cell_new)
        if mask_tail:
            valid = (c * Tc + t) < seq_len                          # hold state on padded steps
            h_new = jnp.where(valid, h_new, h)
            cell_new = jnp.where(valid, cell_new, cell)

        @pl.when(keep_seq)
        def _():
            seq_sc[t] = h_new.astype(seq_sc.dtype)                  # input for next layer

        return h_new, cell_new

    h_last, c_last = lax.fori_loop(0, Tc, step, (h_sc[l], c_sc[l]), unroll=True)
    h_sc[l] = h_last
    c_sc[l] = c_last

    # ---- final Linear on the last layer's final (real) hidden state ----
    @pl.when((l == n_layers - 1) & (c == n_chunks - 1))
    def _():
        out_ref[...] = (
            jnp.dot(h_last.astype(jnp.bfloat16), fcw_ref[...],
                    preferred_element_type=jnp.float32)
            + fcb_ref[...]
        )


def lstm_fused_forward(x_tm, wih0, wih_rest, whh, b_all, fcw, fcb, *,
                       chunk, seq_len, vmem_limit_bytes):
    T_pad, B_pad, I = x_tm.shape
    L, H, G = whh.shape
    C_pad = fcw.shape[1]
    n_chunks = T_pad // chunk
    mask_tail = (T_pad != seq_len)

    kernel = functools.partial(
        _fused_lstm_fc_kernel, hidden=H, chunk=chunk,
        seq_len=seq_len, mask_tail=mask_tail)

    return pl.pallas_call(
        kernel,
        out_shape=jax.ShapeDtypeStruct((B_pad, C_pad), jnp.float32),
        grid_spec=pltpu.PrefetchScalarGridSpec(
            num_scalar_prefetch=0,
            grid=(n_chunks, L),
            in_specs=[
                # x: chunk-indexed (independent of l -> one DMA per chunk).
                pl.BlockSpec((chunk, B_pad, I), lambda c, l: (c, 0, 0)),
                # All weights / biases: VMEM-resident for the whole call.
                pl.BlockSpec((I, G), lambda c, l: (0, 0)),
                pl.BlockSpec((L, H, G), lambda c, l: (0, 0, 0)),
                pl.BlockSpec((L, H, G), lambda c, l: (0, 0, 0)),
                pl.BlockSpec((L, 1, G), lambda c, l: (0, 0, 0)),
                pl.BlockSpec((H, C_pad), lambda c, l: (0, 0)),
                pl.BlockSpec((1, C_pad), lambda c, l: (0, 0)),
            ],
            out_specs=pl.BlockSpec((B_pad, C_pad), lambda c, l: (0, 0)),
            scratch_shapes=[
                pltpu.VMEM((chunk, B_pad, H), jnp.bfloat16),   # inter-layer chunk seq
                pltpu.VMEM((chunk, B_pad, G), jnp.float32),    # chunk pre-gates
                pltpu.VMEM((L, B_pad, H), jnp.float32),        # per-layer h state
                pltpu.VMEM((L, B_pad, H), jnp.float32),        # per-layer c state
            ],
        ),
        compiler_params=pltpu.CompilerParams(
            # Both axes carry state through scratch -> strictly sequential.
            dimension_semantics=("arbitrary", "arbitrary"),
            vmem_limit_bytes=vmem_limit_bytes,
        ),
    )(x_tm, wih0, wih_rest, whh, b_all, fcw, fcb)


# ------------------------------------ Forward wrapper ------------------------------------
def _forward_impl(x, p, *, num_classes, vmem_ceiling):
    B, T, I = x.shape
    L, H, G = p["whh"].shape
    C_pad = p["fcw"].shape[1]

    # bf16 packs 16 rows per vreg along sublanes; 16 also keeps the in-kernel
    # (Tc, Bp, *) <-> (Tc*Bp, *) reshapes exact tile stacks.
    B_pad = _round_up(max(B, 16), 16)
    # Fixed time chunk (unroll capped at 16); tail timesteps are masked in-kernel.
    # For long sequences on v6e/v7x, pick Tc so Tc*B_pad >= 256 rows per projection.
    Tc = min(16, _round_up(T, 8))
    T_pad = _round_up(T, Tc)

    x_tm = jnp.zeros((T_pad, B_pad, I), jnp.bfloat16)
    x_tm = x_tm.at[:T, :B].set(jnp.transpose(x, (1, 0, 2)).astype(jnp.bfloat16))

    # Scoped-VMEM budget from the static shapes (x2 for double-buffered blocks,
    # generous safety factor for layout padding), clamped to the chip ceiling.
    est = 2 * (Tc * B_pad * I * 2 + I * G * 2 + 2 * L * H * G * 2 + L * G * 4
               + H * C_pad * 2 + C_pad * 4 + B_pad * C_pad * 4)
    est += Tc * B_pad * H * 2 + Tc * B_pad * G * 4 + 2 * L * B_pad * H * 4
    vmem_limit = int(min(max(4 * est, 16 << 20), vmem_ceiling))

    out_pad = lstm_fused_forward(
        x_tm, p["wih0"], p["wih_rest"], p["whh"], p["b"], p["fcw"], p["fcb"],
        chunk=Tc, seq_len=T, vmem_limit_bytes=vmem_limit)
    return out_pad[:B, :num_classes]


class LSTMModelPallas:
    def __init__(self, input_size, hidden_size, num_layers, dropout, num_classes, key):
        del dropout  # nn.LSTM applies inter-layer dropout only in training mode
        self.input_size = input_size
        self.hidden_size = hidden_size
        self.num_layers = num_layers
        self.num_classes = num_classes
        H = hidden_size
        G = 4 * H
        k = 1.0 / jnp.sqrt(jnp.float32(H))

        # f32 "PyTorch-layout" parameters (also used by the pure-JAX reference).
        self.params_f32 = []
        for layer in range(num_layers):
            in_dim = input_size if layer == 0 else H
            key, k1, k2, k3, k4 = jax.random.split(key, 5)
            w_ih = jax.random.uniform(k1, (G, in_dim), jnp.float32, -k, k)
            w_hh = jax.random.uniform(k2, (G, H), jnp.float32, -k, k)
            b_ih = jax.random.uniform(k3, (G,), jnp.float32, -k, k)
            b_hh = jax.random.uniform(k4, (G,), jnp.float32, -k, k)
            # Pre-transpose for x @ W^T; fold the two biases together.
            self.params_f32.append((w_ih.T, w_hh.T, (b_ih + b_hh).reshape(1, G)))
        key, k5, k6 = jax.random.split(key, 3)
        fc_w = jax.random.uniform(k5, (num_classes, H), jnp.float32, -k, k)
        fc_b = jax.random.uniform(k6, (num_classes,), jnp.float32, -k, k)
        self.fc_w_t_f32 = fc_w.T                    # (H, C)
        self.fc_b_f32 = fc_b.reshape(1, num_classes)

        # Packed / padded / bf16-cast kernel operands.
        C_pad = _round_up(max(num_classes, 128), 128)   # lane-dense FC output store
        wih_rest = jnp.zeros((num_layers, H, G), jnp.float32)
        whh_all = jnp.zeros((num_layers, H, G), jnp.float32)
        b_all = jnp.zeros((num_layers, 1, G), jnp.float32)
        for layer, (w_ih_t, w_hh_t, bias) in enumerate(self.params_f32):
            whh_all = whh_all.at[layer].set(w_hh_t)
            b_all = b_all.at[layer].set(bias)
            if layer > 0:                               # layer 0's W_ih goes in wih0
                wih_rest = wih_rest.at[layer].set(w_ih_t)
        fcw_pad = jnp.zeros((H, C_pad), jnp.float32).at[:, :num_classes].set(self.fc_w_t_f32)
        fcb_pad = jnp.zeros((1, C_pad), jnp.float32).at[:, :num_classes].set(self.fc_b_f32)
        self.packed = {
            "wih0": self.params_f32[0][0].astype(jnp.bfloat16),   # (I, 4H)
            "wih_rest": wih_rest.astype(jnp.bfloat16),            # (L, H, 4H), slot 0 unused
            "whh": whh_all.astype(jnp.bfloat16),                  # (L, H, 4H)
            "b": b_all,                                           # (L, 1, 4H) f32
            "fcw": fcw_pad.astype(jnp.bfloat16),                  # (H, C_pad)
            "fcb": fcb_pad,                                       # (1, C_pad) f32
        }
        self._fwd = jax.jit(functools.partial(
            _forward_impl, num_classes=num_classes,
            vmem_ceiling=_vmem_ceiling_bytes()))

    def __call__(self, x):
        # x: (B, T, input_size) float32, batch_first (like PyTorch)
        return self._fwd(x, self.packed)


# ---------------------------------- Pure-JAX reference ----------------------------------
def reference_forward(model, x, matmul_dtype=jnp.float32):
    """lax.scan reference.  matmul_dtype=bfloat16 mirrors the kernel's bf16-operand /
    f32-accumulation matmuls; float32 gives exact nn.LSTM math."""
    H = model.hidden_size

    def mm(a, b):
        return jnp.dot(a.astype(matmul_dtype), b.astype(matmul_dtype),
                       preferred_element_type=jnp.float32)

    seq = jnp.transpose(x, (1, 0, 2)).astype(jnp.float32)   # (T, B, I)
    for (w_ih_t, w_hh_t, bias) in model.params_f32:
        B = seq.shape[1]
        h0 = jnp.zeros((B, H), jnp.float32)
        c0 = jnp.zeros((B, H), jnp.float32)

        def step(carry, x_t, w_ih_t=w_ih_t, w_hh_t=w_hh_t, bias=bias):
            h, c = carry
            g = mm(x_t, w_ih_t) + mm(h, w_hh_t) + bias
            i = jax.nn.sigmoid(g[:, 0:H])
            f = jax.nn.sigmoid(g[:, H:2 * H])
            gg = jnp.tanh(g[:, 2 * H:3 * H])
            o = jax.nn.sigmoid(g[:, 3 * H:4 * H])
            c = f * c + i * gg
            h = o * jnp.tanh(c)
            return (h, c), h

        (_, _), seq = lax.scan(step, (h0, c0), seq)
    return mm(seq[-1], model.fc_w_t_f32) + model.fc_b_f32


if __name__ == "__main__":
    B, T = 2, 8
    input_size, hidden_size, num_layers, dropout, num_classes = 16, 32, 2, 0.25, 3

    key = jax.random.PRNGKey(0)
    key, xk, pk = jax.random.split(key, 3)
    x = jax.random.normal(xk, (B, T, input_size), jnp.float32)

    model = LSTMModelPallas(input_size, hidden_size, num_layers, dropout,
                            num_classes, pk)

    out = jax.block_until_ready(model(x))
    assert out.shape == (B, num_classes)

    # Tight check vs. a reference that mirrors the kernel's bf16-operand matmuls.
    ref_bf16 = reference_forward(model, x, matmul_dtype=jnp.bfloat16)
    assert jnp.allclose(out, ref_bf16, atol=1e-2, rtol=1e-2), \
        "mismatch vs bf16-matmul reference"

    # Sanity check vs. full-f32 PyTorch-equivalent math (bf16 matmul operands are an
    # inference-only precision tradeoff; error compounds over T steps and L layers).
    ref_f32 = reference_forward(model, x, matmul_dtype=jnp.float32)
    assert jnp.allclose(out, ref_f32, atol=1.5e-1, rtol=1.5e-1), \
        "mismatch vs f32 reference"

    print("KERNEL_OK")
</pallas_src>

<mosaic_0001>
module attributes {stable_mosaic.version = 11 : i64} {
  func.func @_fused_lstm_fc_kernel(%arg0: i32, %arg1: i32, %arg2: memref<8x16x16xbf16, #tpu.memory_space<vmem>>, %arg3: memref<16x128xbf16, #tpu.memory_space<vmem>>, %arg4: memref<2x32x128xbf16, #tpu.memory_space<vmem>>, %arg5: memref<2x32x128xbf16, #tpu.memory_space<vmem>>, %arg6: memref<2x1x128xf32, #tpu.memory_space<vmem>>, %arg7: memref<32x128xbf16, #tpu.memory_space<vmem>>, %arg8: memref<1x128xf32, #tpu.memory_space<vmem>>, %arg9: memref<16x128xf32, #tpu.memory_space<vmem>>, %arg10: memref<8x16x32xbf16, #tpu.memory_space<vmem>>, %arg11: memref<8x16x128xf32, #tpu.memory_space<vmem>>, %arg12: memref<2x16x32xf32, #tpu.memory_space<vmem>>, %arg13: memref<2x16x32xf32, #tpu.memory_space<vmem>>) attributes {dimension_semantics = [#tpu.dimension_semantics<arbitrary>, #tpu.dimension_semantics<arbitrary>], iteration_bounds = array<i64: 1, 2>, scalar_prefetch = 0 : i64, scratch_operands = 4 : i64, tpu.core_type = #tpu.core_type<tc>, window_params = [{transform_indices = @transform_0, window_bounds = array<i64: 8, 16, 16>}, {pipeline_mode = #tpu.pipeline_mode<synchronous>, transform_indices = @transform_1, window_bounds = array<i64: 16, 128>}, {pipeline_mode = #tpu.pipeline_mode<synchronous>, transform_indices = @transform_2, window_bounds = array<i64: 2, 32, 128>}, {pipeline_mode = #tpu.pipeline_mode<synchronous>, transform_indices = @transform_3, window_bounds = array<i64: 2, 32, 128>}, {pipeline_mode = #tpu.pipeline_mode<synchronous>, transform_indices = @transform_4, window_bounds = array<i64: 2, 1, 128>}, {pipeline_mode = #tpu.pipeline_mode<synchronous>, transform_indices = @transform_5, window_bounds = array<i64: 32, 128>}, {pipeline_mode = #tpu.pipeline_mode<synchronous>, transform_indices = @transform_6, window_bounds = array<i64: 1, 128>}, {pipeline_mode = #tpu.pipeline_mode<synchronous>, transform_indices = @transform_7, window_bounds = array<i64: 16, 128>}]} {
    %c0_i32 = arith.constant 0 : i32
    %0 = arith.cmpi eq, %arg0, %c0_i32 : i32
    %c0_i32_0 = arith.constant 0 : i32
    %1 = arith.cmpi eq, %arg1, %c0_i32_0 : i32
    %2 = arith.andi %0, %1 : i1
    %3 = arith.extui %2 : i1 to i32
    %c0_i32_1 = arith.constant 0 : i32
    %4 = arith.cmpi ne, %3, %c0_i32_1 : i32
    scf.if %4 {
      %cst_77 = arith.constant 0.000000e+00 : f32
      %301 = vector.broadcast %cst_77 : f32 to vector<16x128xf32>
      %c0_78 = arith.constant 0 : index
      %c0_79 = arith.constant 0 : index
      %302 = vector.load %arg9[%c0_78, %c0_79] : memref<16x128xf32, #tpu.memory_space<vmem>>, vector<16x128xf32>
      tpu.vector_store %arg9[%c0_78, %c0_79], %301 {strides = array<i32>} : memref<16x128xf32, #tpu.memory_space<vmem>>, vector<16x128xf32>,
    } else {
    }
    %c0_i32_2 = arith.constant 0 : i32
    %5 = arith.cmpi eq, %arg0, %c0_i32_2 : i32
    %6 = arith.extui %5 : i1 to i32
    %c0_i32_3 = arith.constant 0 : i32
    %7 = arith.cmpi ne, %6, %c0_i32_3 : i32
    scf.if %7 {
      %cst_77 = arith.constant 0.000000e+00 : f32
      %301 = vector.broadcast %cst_77 : f32 to vector<16x32xf32>
      %302 = arith.index_cast %arg1 : i32 to index
      %c0_78 = arith.constant 0 : index
      %c0_79 = arith.constant 0 : index
      %303 = vector.load %arg12[%302, %c0_78, %c0_79] : memref<2x16x32xf32, #tpu.memory_space<vmem>>, vector<1x16x32xf32>
      %304 = vector.shape_cast %303 : vector<1x16x32xf32> to vector<16x32xf32>
      %305 = vector.shape_cast %301 : vector<16x32xf32> to vector<1x16x32xf32>
      tpu.vector_store %arg12[%302, %c0_78, %c0_79], %305 {strides = array<i32>} : memref<2x16x32xf32, #tpu.memory_space<vmem>>, vector<1x16x32xf32>,
      %306 = arith.index_cast %arg1 : i32 to index
      %c0_80 = arith.constant 0 : index
      %c0_81 = arith.constant 0 : index
      %307 = vector.load %arg13[%306, %c0_80, %c0_81] : memref<2x16x32xf32, #tpu.memory_space<vmem>>, vector<1x16x32xf32>
      %308 = vector.shape_cast %307 : vector<1x16x32xf32> to vector<16x32xf32>
      %309 = vector.shape_cast %301 : vector<16x32xf32> to vector<1x16x32xf32>
      tpu.vector_store %arg13[%306, %c0_80, %c0_81], %309 {strides = array<i32>} : memref<2x16x32xf32, #tpu.memory_space<vmem>>, vector<1x16x32xf32>,
    } else {
    }
    %c0_i32_4 = arith.constant 0 : i32
    %8 = arith.cmpi eq, %arg1, %c0_i32_4 : i32
    %9 = arith.extui %8 : i1 to i32
    %c0_i32_5 = arith.constant 0 : i32
    %10 = arith.cmpi ne, %9, %c0_i32_5 : i32
    scf.if %10 {
      %c0_77 = arith.constant 0 : index
      %c0_78 = arith.constant 0 : index
      %c0_79 = arith.constant 0 : index
      %301 = vector.load %arg2[%c0_77, %c0_78, %c0_79] : memref<8x16x16xbf16, #tpu.memory_space<vmem>>, vector<8x16x16xbf16>
      %302 = vector.shape_cast %301 : vector<8x16x16xbf16> to vector<128x16xbf16>
      %c0_80 = arith.constant 0 : index
      %c0_81 = arith.constant 0 : index
      %303 = vector.load %arg3[%c0_80, %c0_81] : memref<16x128xbf16, #tpu.memory_space<vmem>>, vector<16x128xbf16>
      %cst_82 = arith.constant dense<0.000000e+00> : vector<128x128xf32>
      %304 = tpu.matmul %302, %303, %cst_82 {dimension_numbers = #tpu.dot_dimension_numbers<[1], [0], [0], [1], [0, 0, 1, 1], [], []>} : vector<128x16xbf16>, vector<16x128xbf16>, vector<128x128xf32> -> vector<128x128xf32>
      %305 = vector.shape_cast %304 : vector<128x128xf32> to vector<8x16x128xf32>
      %306 = arith.index_cast %arg1 : i32 to index
      %c0_83 = arith.constant 0 : index
      %c0_84 = arith.constant 0 : index
      %307 = vector.load %arg6[%306, %c0_83, %c0_84] : memref<2x1x128xf32, #tpu.memory_space<vmem>>, vector<1x1x128xf32>
      %308 = vector.shape_cast %307 : vector<1x1x128xf32> to vector<1x128xf32>
      %309 = vector.shape_cast %308 : vector<1x128xf32> to vector<1x1x128xf32>
      %310 = vector.broadcast %309 : vector<1x1x128xf32> to vector<8x16x128xf32>
      %311 = arith.addf %305, %310 : vector<8x16x128xf32>
      %c0_85 = arith.constant 0 : index
      %c0_86 = arith.constant 0 : index
      %c0_87 = arith.constant 0 : index
      %312 = vector.load %arg11[%c0_85, %c0_86, %c0_87] : memref<8x16x128xf32, #tpu.memory_space<vmem>>, vector<8x16x128xf32>
      tpu.vector_store %arg11[%c0_85, %c0_86, %c0_87], %311 {strides = array<i32>} : memref<8x16x128xf32, #tpu.memory_space<vmem>>, vector<8x16x128xf32>,
    } else {
    }
    %c0_i32_6 = arith.constant 0 : i32
    %11 = arith.cmpi sgt, %arg1, %c0_i32_6 : i32
    %12 = arith.extui %11 : i1 to i32
    %c0_i32_7 = arith.constant 0 : i32
    %13 = arith.cmpi ne, %12, %c0_i32_7 : i32
    scf.if %13 {
      %c0_77 = arith.constant 0 : index
      %c0_78 = arith.constant 0 : index
      %c0_79 = arith.constant 0 : index
      %301 = vector.load %arg10[%c0_77, %c0_78, %c0_79] : memref<8x16x32xbf16, #tpu.memory_space<vmem>>, vector<8x16x32xbf16>
      %302 = vector.shape_cast %301 : vector<8x16x32xbf16> to vector<128x32xbf16>
      %303 = arith.index_cast %arg1 : i32 to index
      %c0_80 = arith.constant 0 : index
      %c0_81 = arith.constant 0 : index
      %304 = vector.load %arg4[%303, %c0_80, %c0_81] : memref<2x32x128xbf16, #tpu.memory_space<vmem>>, vector<1x32x128xbf16>
      %305 = vector.shape_cast %304 : vector<1x32x128xbf16> to vector<32x128xbf16>
      %cst_82 = arith.constant dense<0.000000e+00> : vector<128x128xf32>
      %306 = tpu.matmul %302, %305, %cst_82 {dimension_numbers = #tpu.dot_dimension_numbers<[1], [0], [0], [1], [0, 0, 1, 1], [], []>} : vector<128x32xbf16>, vector<32x128xbf16>, vector<128x128xf32> -> vector<128x128xf32>
      %307 = vector.shape_cast %306 : vector<128x128xf32> to vector<8x16x128xf32>
      %308 = arith.index_cast %arg1 : i32 to index
      %c0_83 = arith.constant 0 : index
      %c0_84 = arith.constant 0 : index
      %309 = vector.load %arg6[%308, %c0_83, %c0_84] : memref<2x1x128xf32, #tpu.memory_space<vmem>>, vector<1x1x128xf32>
      %310 = vector.shape_cast %309 : vector<1x1x128xf32> to vector<1x128xf32>
      %311 = vector.shape_cast %310 : vector<1x128xf32> to vector<1x1x128xf32>
      %312 = vector.broadcast %311 : vector<1x1x128xf32> to vector<8x16x128xf32>
      %313 = arith.addf %307, %312 : vector<8x16x128xf32>
      %c0_85 = arith.constant 0 : index
      %c0_86 = arith.constant 0 : index
      %c0_87 = arith.constant 0 : index
      %314 = vector.load %arg11[%c0_85, %c0_86, %c0_87] : memref<8x16x128xf32, #tpu.memory_space<vmem>>, vector<8x16x128xf32>
      tpu.vector_store %arg11[%c0_85, %c0_86, %c0_87], %313 {strides = array<i32>} : memref<8x16x128xf32, #tpu.memory_space<vmem>>, vector<8x16x128xf32>,
    } else {
    }
    %14 = arith.index_cast %arg1 : i32 to index
    %c0 = arith.constant 0 : index
    %c0_8 = arith.constant 0 : index
    %15 = vector.load %arg5[%14, %c0, %c0_8] : memref<2x32x128xbf16, #tpu.memory_space<vmem>>, vector<1x32x128xbf16>
    %16 = vector.shape_cast %15 : vector<1x32x128xbf16> to vector<32x128xbf16>
    %c1_i32 = arith.constant 1 : i32
    %17 = arith.cmpi slt, %arg1, %c1_i32 : i32
    %18 = arith.index_cast %arg1 : i32 to index
    %c0_9 = arith.constant 0 : index
    %c0_10 = arith.constant 0 : index
    %19 = vector.load %arg12[%18, %c0_9, %c0_10] : memref<2x16x32xf32, #tpu.memory_space<vmem>>, vector<1x16x32xf32>
    %20 = vector.shape_cast %19 : vector<1x16x32xf32> to vector<16x32xf32>
    %21 = arith.index_cast %arg1 : i32 to index
    %c0_11 = arith.constant 0 : index
    %c0_12 = arith.constant 0 : index
    %22 = vector.load %arg13[%21, %c0_11, %c0_12] : memref<2x16x32xf32, #tpu.memory_space<vmem>>, vector<1x16x32xf32>
    %23 = vector.shape_cast %22 : vector<1x16x32xf32> to vector<16x32xf32>
    %c0_i32_13 = arith.constant 0 : i32
    %24 = arith.index_cast %c0_i32_13 : i32 to index
    %c0_14 = arith.constant 0 : index
    %c0_15 = arith.constant 0 : index
    %25 = vector.load %arg11[%24, %c0_14, %c0_15] : memref<8x16x128xf32, #tpu.memory_space<vmem>>, vector<1x16x128xf32>
    %26 = vector.shape_cast %25 : vector<1x16x128xf32> to vector<16x128xf32>
    %27 = arith.truncf %20 : vector<16x32xf32> to vector<16x32xbf16>
    %cst = arith.constant dense<0.000000e+00> : vector<16x128xf32>
    %28 = tpu.matmul %27, %16, %cst {dimension_numbers = #tpu.dot_dimension_numbers<[1], [0], [0], [1], [0, 0, 1, 1], [], []>} : vector<16x32xbf16>, vector<32x128xbf16>, vector<16x128xf32> -> vector<16x128xf32>
    %29 = arith.addf %26, %28 : vector<16x128xf32>
    %30 = vector.extract_strided_slice %29 {offsets = [0, 0], sizes = [16, 32], strides = [1, 1]} : vector<16x128xf32> to vector<16x32xf32>
    %31 = arith.negf %30 : vector<16x32xf32>
    %32 = math.exp %31 : vector<16x32xf32>
    %cst_16 = arith.constant 1.000000e+00 : f32
    %33 = vector.broadcast %cst_16 : f32 to vector<16x32xf32>
    %34 = arith.addf %33, %32 : vector<16x32xf32>
    %35 = arith.divf %33, %34 : vector<16x32xf32>
    %36 = vector.extract_strided_slice %29 {offsets = [0, 32], sizes = [16, 32], strides = [1, 1]} : vector<16x128xf32> to vector<16x32xf32>
    %37 = arith.negf %36 : vector<16x32xf32>
    %38 = math.exp %37 : vector<16x32xf32>
    %cst_17 = arith.constant 1.000000e+00 : f32
    %39 = vector.broadcast %cst_17 : f32 to vector<16x32xf32>
    %40 = arith.addf %39, %38 : vector<16x32xf32>
    %41 = arith.divf %39, %40 : vector<16x32xf32>
    %42 = vector.extract_strided_slice %29 {offsets = [0, 64], sizes = [16, 32], strides = [1, 1]} : vector<16x128xf32> to vector<16x32xf32>
    %43 = math.tanh %42 : vector<16x32xf32>
    %44 = vector.extract_strided_slice %29 {offsets = [0, 96], sizes = [16, 32], strides = [1, 1]} : vector<16x128xf32> to vector<16x32xf32>
    %45 = arith.negf %44 : vector<16x32xf32>
    %46 = math.exp %45 : vector<16x32xf32>
    %cst_18 = arith.constant 1.000000e+00 : f32
    %47 = vector.broadcast %cst_18 : f32 to vector<16x32xf32>
    %48 = arith.addf %47, %46 : vector<16x32xf32>
    %49 = arith.divf %47, %48 : vector<16x32xf32>
    %50 = arith.mulf %41, %23 : vector<16x32xf32>
    %51 = arith.mulf %35, %43 : vector<16x32xf32>
    %52 = arith.addf %50, %51 : vector<16x32xf32>
    %53 = math.tanh %52 : vector<16x32xf32>
    %54 = arith.mulf %49, %53 : vector<16x32xf32>
    %55 = arith.extui %17 : i1 to i32
    %c0_i32_19 = arith.constant 0 : i32
    %56 = arith.cmpi ne, %55, %c0_i32_19 : i32
    scf.if %56 {
      %301 = arith.truncf %54 : vector<16x32xf32> to vector<16x32xbf16>
      %302 = arith.index_cast %c0_i32_13 : i32 to index
      %c0_77 = arith.constant 0 : index
      %c0_78 = arith.constant 0 : index
      %303 = vector.load %arg10[%302, %c0_77, %c0_78] : memref<8x16x32xbf16, #tpu.memory_space<vmem>>, vector<1x16x32xbf16>
      %304 = vector.shape_cast %303 : vector<1x16x32xbf16> to vector<16x32xbf16>
      %305 = vector.shape_cast %301 : vector<16x32xbf16> to vector<1x16x32xbf16>
      tpu.vector_store %arg10[%302, %c0_77, %c0_78], %305 {strides = array<i32>} : memref<8x16x32xbf16, #tpu.memory_space<vmem>>, vector<1x16x32xbf16>,
    } else {
    }
    %c1_i32_20 = arith.constant 1 : i32
    %57 = arith.index_cast %c1_i32_20 : i32 to index
    %c0_21 = arith.constant 0 : index
    %c0_22 = arith.constant 0 : index
    %58 = vector.load %arg11[%57, %c0_21, %c0_22] : memref<8x16x128xf32, #tpu.memory_space<vmem>>, vector<1x16x128xf32>
    %59 = vector.shape_cast %58 : vector<1x16x128xf32> to vector<16x128xf32>
    %60 = arith.truncf %54 : vector<16x32xf32> to vector<16x32xbf16>
    %cst_23 = arith.constant dense<0.000000e+00> : vector<16x128xf32>
    %61 = tpu.matmul %60, %16, %cst_23 {dimension_numbers = #tpu.dot_dimension_numbers<[1], [0], [0], [1], [0, 0, 1, 1], [], []>} : vector<16x32xbf16>, vector<32x128xbf16>, vector<16x128xf32> -> vector<16x128xf32>
    %62 = arith.addf %59, %61 : vector<16x128xf32>
    %63 = vector.extract_strided_slice %62 {offsets = [0, 0], sizes = [16, 32], strides = [1, 1]} : vector<16x128xf32> to vector<16x32xf32>
    %64 = arith.negf %63 : vector<16x32xf32>
    %65 = math.exp %64 : vector<16x32xf32>
    %cst_24 = arith.constant 1.000000e+00 : f32
    %66 = vector.broadcast %cst_24 : f32 to vector<16x32xf32>
    %67 = arith.addf %66, %65 : vector<16x32xf32>
    %68 = arith.divf %66, %67 : vector<16x32xf32>
    %69 = vector.extract_strided_slice %62 {offsets = [0, 32], sizes = [16, 32], strides = [1, 1]} : vector<16x128xf32> to vector<16x32xf32>
    %70 = arith.negf %69 : vector<16x32xf32>
    %71 = math.exp %70 : vector<16x32xf32>
    %cst_25 = arith.constant 1.000000e+00 : f32
    %72 = vector.broadcast %cst_25 : f32 to vector<16x32xf32>
    %73 = arith.addf %72, %71 : vector<16x32xf32>
    %74 = arith.divf %72, %73 : vector<16x32xf32>
    %75 = vector.extract_strided_slice %62 {offsets = [0, 64], sizes = [16, 32], strides = [1, 1]} : vector<16x128xf32> to vector<16x32xf32>
    %76 = math.tanh %75 : vector<16x32xf32>
    %77 = vector.extract_strided_slice %62 {offsets = [0, 96], sizes = [16, 32], strides = [1, 1]} : vector<16x128xf32> to vector<16x32xf32>
    %78 = arith.negf %77 : vector<16x32xf32>
    %79 = math.exp %78 : vector<16x32xf32>
    %cst_26 = arith.constant 1.000000e+00 : f32
    %80 = vector.broadcast %cst_26 : f32 to vector<16x32xf32>
    %81 = arith.addf %80, %79 : vector<16x32xf32>
    %82 = arith.divf %80, %81 : vector<16x32xf32>
    %83 = arith.mulf %74, %52 : vector<16x32xf32>
    %84 = arith.mulf %68, %76 : vector<16x32xf32>
    %85 = arith.addf %83, %84 : vector<16x32xf32>
    %86 = math.tanh %85 : vector<16x32xf32>
    %87 = arith.mulf %82, %86 : vector<16x32xf32>
    %88 = arith.extui %17 : i1 to i32
    %c0_i32_27 = arith.constant 0 : i32
    %89 = arith.cmpi ne, %88, %c0_i32_27 : i32
    scf.if %89 {
      %301 = arith.truncf %87 : vector<16x32xf32> to vector<16x32xbf16>
      %302 = arith.index_cast %c1_i32_20 : i32 to index
      %c0_77 = arith.constant 0 : index
      %c0_78 = arith.constant 0 : index
      %303 = vector.load %arg10[%302, %c0_77, %c0_78] : memref<8x16x32xbf16, #tpu.memory_space<vmem>>, vector<1x16x32xbf16>
      %304 = vector.shape_cast %303 : vector<1x16x32xbf16> to vector<16x32xbf16>
      %305 = vector.shape_cast %301 : vector<16x32xbf16> to vector<1x16x32xbf16>
      tpu.vector_store %arg10[%302, %c0_77, %c0_78], %305 {strides = array<i32>} : memref<8x16x32xbf16, #tpu.memory_space<vmem>>, vector<1x16x32xbf16>,
    } else {
    }
    %c2_i32 = arith.constant 2 : i32
    %90 = arith.index_cast %c2_i32 : i32 to index
    %c0_28 = arith.constant 0 : index
    %c0_29 = arith.constant 0 : index
    %91 = vector.load %arg11[%90, %c0_28, %c0_29] : memref<8x16x128xf32, #tpu.memory_space<vmem>>, vector<1x16x128xf32>
    %92 = vector.shape_cast %91 : vector<1x16x128xf32> to vector<16x128xf32>
    %93 = arith.truncf %87 : vector<16x32xf32> to vector<16x32xbf16>
    %cst_30 = arith.constant dense<0.000000e+00> : vector<16x128xf32>
    %94 = tpu.matmul %93, %16, %cst_30 {dimension_numbers = #tpu.dot_dimension_numbers<[1], [0], [0], [1], [0, 0, 1, 1], [], []>} : vector<16x32xbf16>, vector<32x128xbf16>, vector<16x128xf32> -> vector<16x128xf32>
    %95 = arith.addf %92, %94 : vector<16x128xf32>
    %96 = vector.extract_strided_slice %95 {offsets = [0, 0], sizes = [16, 32], strides = [1, 1]} : vector<16x128xf32> to vector<16x32xf32>
    %97 = arith.negf %96 : vector<16x32xf32>
    %98 = math.exp %97 : vector<16x32xf32>
    %cst_31 = arith.constant 1.000000e+00 : f32
    %99 = vector.broadcast %cst_31 : f32 to vector<16x32xf32>
    %100 = arith.addf %99, %98 : vector<16x32xf32>
    %101 = arith.divf %99, %100 : vector<16x32xf32>
    %102 = vector.extract_strided_slice %95 {offsets = [0, 32], sizes = [16, 32], strides = [1, 1]} : vector<16x128xf32> to vector<16x32xf32>
    %103 = arith.negf %102 : vector<16x32xf32>
    %104 = math.exp %103 : vector<16x32xf32>
    %cst_32 = arith.constant 1.000000e+00 : f32
    %105 = vector.broadcast %cst_32 : f32 to vector<16x32xf32>
    %106 = arith.addf %105, %104 : vector<16x32xf32>
    %107 = arith.divf %105, %106 : vector<16x32xf32>
    %108 = vector.extract_strided_slice %95 {offsets = [0, 64], sizes = [16, 32], strides = [1, 1]} : vector<16x128xf32> to vector<16x32xf32>
    %109 = math.tanh %108 : vector<16x32xf32>
    %110 = vector.extract_strided_slice %95 {offsets = [0, 96], sizes = [16, 32], strides = [1, 1]} : vector<16x128xf32> to vector<16x32xf32>
    %111 = arith.negf %110 : vector<16x32xf32>
    %112 = math.exp %111 : vector<16x32xf32>
    %cst_33 = arith.constant 1.000000e+00 : f32
    %113 = vector.broadcast %cst_33 : f32 to vector<16x32xf32>
    %114 = arith.addf %113, %112 : vector<16x32xf32>
    %115 = arith.divf %113, %114 : vector<16x32xf32>
    %116 = arith.mulf %107, %85 : vector<16x32xf32>
    %117 = arith.mulf %101, %109 : vector<16x32xf32>
    %118 = arith.addf %116, %117 : vector<16x32xf32>
    %119 = math.tanh %118 : vector<16x32xf32>
    %120 = arith.mulf %115, %119 : vector<16x32xf32>
    %121 = arith.extui %17 : i1 to i32
    %c0_i32_34 = arith.constant 0 : i32
    %122 = arith.cmpi ne, %121, %c0_i32_34 : i32
    scf.if %122 {
      %301 = arith.truncf %120 : vector<16x32xf32> to vector<16x32xbf16>
      %302 = arith.index_cast %c2_i32 : i32 to index
      %c0_77 = arith.constant 0 : index
      %c0_78 = arith.constant 0 : index
      %303 = vector.load %arg10[%302, %c0_77, %c0_78] : memref<8x16x32xbf16, #tpu.memory_space<vmem>>, vector<1x16x32xbf16>
      %304 = vector.shape_cast %303 : vector<1x16x32xbf16> to vector<16x32xbf16>
      %305 = vector.shape_cast %301 : vector<16x32xbf16> to vector<1x16x32xbf16>
      tpu.vector_store %arg10[%302, %c0_77, %c0_78], %305 {strides = array<i32>} : memref<8x16x32xbf16, #tpu.memory_space<vmem>>, vector<1x16x32xbf16>,
    } else {
    }
    %c3_i32 = arith.constant 3 : i32
    %123 = arith.index_cast %c3_i32 : i32 to index
    %c0_35 = arith.constant 0 : index
    %c0_36 = arith.constant 0 : index
    %124 = vector.load %arg11[%123, %c0_35, %c0_36] : memref<8x16x128xf32, #tpu.memory_space<vmem>>, vector<1x16x128xf32>
    %125 = vector.shape_cast %124 : vector<1x16x128xf32> to vector<16x128xf32>
    %126 = arith.truncf %120 : vector<16x32xf32> to vector<16x32xbf16>
    %cst_37 = arith.constant dense<0.000000e+00> : vector<16x128xf32>
    %127 = tpu.matmul %126, %16, %cst_37 {dimension_numbers = #tpu.dot_dimension_numbers<[1], [0], [0], [1], [0, 0, 1, 1], [], []>} : vector<16x32xbf16>, vector<32x128xbf16>, vector<16x128xf32> -> vector<16x128xf32>
    %128 = arith.addf %125, %127 : vector<16x128xf32>
    %129 = vector.extract_strided_slice %128 {offsets = [0, 0], sizes = [16, 32], strides = [1, 1]} : vector<16x128xf32> to vector<16x32xf32>
    %130 = arith.negf %129 : vector<16x32xf32>
    %131 = math.exp %130 : vector<16x32xf32>
    %cst_38 = arith.constant 1.000000e+00 : f32
    %132 = vector.broadcast %cst_38 : f32 to vector<16x32xf32>
    %133 = arith.addf %132, %131 : vector<16x32xf32>
    %134 = arith.divf %132, %133 : vector<16x32xf32>
    %135 = vector.extract_strided_slice %128 {offsets = [0, 32], sizes = [16, 32], strides = [1, 1]} : vector<16x128xf32> to vector<16x32xf32>
    %136 = arith.negf %135 : vector<16x32xf32>
    %137 = math.exp %136 : vector<16x32xf32>
    %cst_39 = arith.constant 1.000000e+00 : f32
    %138 = vector.broadcast %cst_39 : f32 to vector<16x32xf32>
    %139 = arith.addf %138, %137 : vector<16x32xf32>
    %140 = arith.divf %138, %139 : vector<16x32xf32>
    %141 = vector.extract_strided_slice %128 {offsets = [0, 64], sizes = [16, 32], strides = [1, 1]} : vector<16x128xf32> to vector<16x32xf32>
    %142 = math.tanh %141 : vector<16x32xf32>
    %143 = vector.extract_strided_slice %128 {offsets = [0, 96], sizes = [16, 32], strides = [1, 1]} : vector<16x128xf32> to vector<16x32xf32>
    %144 = arith.negf %143 : vector<16x32xf32>
    %145 = math.exp %144 : vector<16x32xf32>
    %cst_40 = arith.constant 1.000000e+00 : f32
    %146 = vector.broadcast %cst_40 : f32 to vector<16x32xf32>
    %147 = arith.addf %146, %145 : vector<16x32xf32>
    %148 = arith.divf %146, %147 : vector<16x32xf32>
    %149 = arith.mulf %140, %118 : vector<16x32xf32>
    %150 = arith.mulf %134, %142 : vector<16x32xf32>
    %151 = arith.addf %149, %150 : vector<16x32xf32>
    %152 = math.tanh %151 : vector<16x32xf32>
    %153 = arith.mulf %148, %152 : vector<16x32xf32>
    %154 = arith.extui %17 : i1 to i32
    %c0_i32_41 = arith.constant 0 : i32
    %155 = arith.cmpi ne, %154, %c0_i32_41 : i32
    scf.if %155 {
      %301 = arith.truncf %153 : vector<16x32xf32> to vector<16x32xbf16>
      %302 = arith.index_cast %c3_i32 : i32 to index
      %c0_77 = arith.constant 0 : index
      %c0_78 = arith.constant 0 : index
      %303 = vector.load %arg10[%302, %c0_77, %c0_78] : memref<8x16x32xbf16, #tpu.memory_space<vmem>>, vector<1x16x32xbf16>
      %304 = vector.shape_cast %303 : vector<1x16x32xbf16> to vector<16x32xbf16>
      %305 = vector.shape_cast %301 : vector<16x32xbf16> to vector<1x16x32xbf16>
      tpu.vector_store %arg10[%302, %c0_77, %c0_78], %305 {strides = array<i32>} : memref<8x16x32xbf16, #tpu.memory_space<vmem>>, vector<1x16x32xbf16>,
    } else {
    }
    %c4_i32 = arith.constant 4 : i32
    %156 = arith.index_cast %c4_i32 : i32 to index
    %c0_42 = arith.constant 0 : index
    %c0_43 = arith.constant 0 : index
    %157 = vector.load %arg11[%156, %c0_42, %c0_43] : memref<8x16x128xf32, #tpu.memory_space<vmem>>, vector<1x16x128xf32>
    %158 = vector.shape_cast %157 : vector<1x16x128xf32> to vector<16x128xf32>
    %159 = arith.truncf %153 : vector<16x32xf32> to vector<16x32xbf16>
    %cst_44 = arith.constant dense<0.000000e+00> : vector<16x128xf32>
    %160 = tpu.matmul %159, %16, %cst_44 {dimension_numbers = #tpu.dot_dimension_numbers<[1], [0], [0], [1], [0, 0, 1, 1], [], []>} : vector<16x32xbf16>, vector<32x128xbf16>, vector<16x128xf32> -> vector<16x128xf32>
    %161 = arith.addf %158, %160 : vector<16x128xf32>
    %162 = vector.extract_strided_slice %161 {offsets = [0, 0], sizes = [16, 32], strides = [1, 1]} : vector<16x128xf32> to vector<16x32xf32>
    %163 = arith.negf %162 : vector<16x32xf32>
    %164 = math.exp %163 : vector<16x32xf32>
    %cst_45 = arith.constant 1.000000e+00 : f32
    %165 = vector.broadcast %cst_45 : f32 to vector<16x32xf32>
    %166 = arith.addf %165, %164 : vector<16x32xf32>
    %167 = arith.divf %165, %166 : vector<16x32xf32>
    %168 = vector.extract_strided_slice %161 {offsets = [0, 32], sizes = [16, 32], strides = [1, 1]} : vector<16x128xf32> to vector<16x32xf32>
    %169 = arith.negf %168 : vector<16x32xf32>
    %170 = math.exp %169 : vector<16x32xf32>
    %cst_46 = arith.constant 1.000000e+00 : f32
    %171 = vector.broadcast %cst_46 : f32 to vector<16x32xf32>
    %172 = arith.addf %171, %170 : vector<16x32xf32>
    %173 = arith.divf %171, %172 : vector<16x32xf32>
    %174 = vector.extract_strided_slice %161 {offsets = [0, 64], sizes = [16, 32], strides = [1, 1]} : vector<16x128xf32> to vector<16x32xf32>
    %175 = math.tanh %174 : vector<16x32xf32>
    %176 = vector.extract_strided_slice %161 {offsets = [0, 96], sizes = [16, 32], strides = [1, 1]} : vector<16x128xf32> to vector<16x32xf32>
    %177 = arith.negf %176 : vector<16x32xf32>
    %178 = math.exp %177 : vector<16x32xf32>
    %cst_47 = arith.constant 1.000000e+00 : f32
    %179 = vector.broadcast %cst_47 : f32 to vector<16x32xf32>
    %180 = arith.addf %179, %178 : vector<16x32xf32>
    %181 = arith.divf %179, %180 : vector<16x32xf32>
    %182 = arith.mulf %173, %151 : vector<16x32xf32>
    %183 = arith.mulf %167, %175 : vector<16x32xf32>
    %184 = arith.addf %182, %183 : vector<16x32xf32>
    %185 = math.tanh %184 : vector<16x32xf32>
    %186 = arith.mulf %181, %185 : vector<16x32xf32>
    %187 = arith.extui %17 : i1 to i32
    %c0_i32_48 = arith.constant 0 : i32
    %188 = arith.cmpi ne, %187, %c0_i32_48 : i32
    scf.if %188 {
      %301 = arith.truncf %186 : vector<16x32xf32> to vector<16x32xbf16>
      %302 = arith.index_cast %c4_i32 : i32 to index
      %c0_77 = arith.constant 0 : index
      %c0_78 = arith.constant 0 : index
      %303 = vector.load %arg10[%302, %c0_77, %c0_78] : memref<8x16x32xbf16, #tpu.memory_space<vmem>>, vector<1x16x32xbf16>
      %304 = vector.shape_cast %303 : vector<1x16x32xbf16> to vector<16x32xbf16>
      %305 = vector.shape_cast %301 : vector<16x32xbf16> to vector<1x16x32xbf16>
      tpu.vector_store %arg10[%302, %c0_77, %c0_78], %305 {strides = array<i32>} : memref<8x16x32xbf16, #tpu.memory_space<vmem>>, vector<1x16x32xbf16>,
    } else {
    }
    %c5_i32 = arith.constant 5 : i32
    %189 = arith.index_cast %c5_i32 : i32 to index
    %c0_49 = arith.constant 0 : index
    %c0_50 = arith.constant 0 : index
    %190 = vector.load %arg11[%189, %c0_49, %c0_50] : memref<8x16x128xf32, #tpu.memory_space<vmem>>, vector<1x16x128xf32>
    %191 = vector.shape_cast %190 : vector<1x16x128xf32> to vector<16x128xf32>
    %192 = arith.truncf %186 : vector<16x32xf32> to vector<16x32xbf16>
    %cst_51 = arith.constant dense<0.000000e+00> : vector<16x128xf32>
    %193 = tpu.matmul %192, %16, %cst_51 {dimension_numbers = #tpu.dot_dimension_numbers<[1], [0], [0], [1], [0, 0, 1, 1], [], []>} : vector<16x32xbf16>, vector<32x128xbf16>, vector<16x128xf32> -> vector<16x128xf32>
    %194 = arith.addf %191, %193 : vector<16x128xf32>
    %195 = vector.extract_strided_slice %194 {offsets = [0, 0], sizes = [16, 32], strides = [1, 1]} : vector<16x128xf32> to vector<16x32xf32>
    %196 = arith.negf %195 : vector<16x32xf32>
    %197 = math.exp %196 : vector<16x32xf32>
    %cst_52 = arith.constant 1.000000e+00 : f32
    %198 = vector.broadcast %cst_52 : f32 to vector<16x32xf32>
    %199 = arith.addf %198, %197 : vector<16x32xf32>
    %200 = arith.divf %198, %199 : vector<16x32xf32>
    %201 = vector.extract_strided_slice %194 {offsets = [0, 32], sizes = [16, 32], strides = [1, 1]} : vector<16x128xf32> to vector<16x32xf32>
    %202 = arith.negf %201 : vector<16x32xf32>
    %203 = math.exp %202 : vector<16x32xf32>
    %cst_53 = arith.constant 1.000000e+00 : f32
    %204 = vector.broadcast %cst_53 : f32 to vector<16x32xf32>
    %205 = arith.addf %204, %203 : vector<16x32xf32>
    %206 = arith.divf %204, %205 : vector<16x32xf32>
    %207 = vector.extract_strided_slice %194 {offsets = [0, 64], sizes = [16, 32], strides = [1, 1]} : vector<16x128xf32> to vector<16x32xf32>
    %208 = math.tanh %207 : vector<16x32xf32>
    %209 = vector.extract_strided_slice %194 {offsets = [0, 96], sizes = [16, 32], strides = [1, 1]} : vector<16x128xf32> to vector<16x32xf32>
    %210 = arith.negf %209 : vector<16x32xf32>
    %211 = math.exp %210 : vector<16x32xf32>
    %cst_54 = arith.constant 1.000000e+00 : f32
    %212 = vector.broadcast %cst_54 : f32 to vector<16x32xf32>
    %213 = arith.addf %212, %211 : vector<16x32xf32>
    %214 = arith.divf %212, %213 : vector<16x32xf32>
    %215 = arith.mulf %206, %184 : vector<16x32xf32>
    %216 = arith.mulf %200, %208 : vector<16x32xf32>
    %217 = arith.addf %215, %216 : vector<16x32xf32>
    %218 = math.tanh %217 : vector<16x32xf32>
    %219 = arith.mulf %214, %218 : vector<16x32xf32>
    %220 = arith.extui %17 : i1 to i32
    %c0_i32_55 = arith.constant 0 : i32
    %221 = arith.cmpi ne, %220, %c0_i32_55 : i32
    scf.if %221 {
      %301 = arith.truncf %219 : vector<16x32xf32> to vector<16x32xbf16>
      %302 = arith.index_cast %c5_i32 : i32 to index
      %c0_77 = arith.constant 0 : index
      %c0_78 = arith.constant 0 : index
      %303 = vector.load %arg10[%302, %c0_77, %c0_78] : memref<8x16x32xbf16, #tpu.memory_space<vmem>>, vector<1x16x32xbf16>
      %304 = vector.shape_cast %303 : vector<1x16x32xbf16> to vector<16x32xbf16>
      %305 = vector.shape_cast %301 : vector<16x32xbf16> to vector<1x16x32xbf16>
      tpu.vector_store %arg10[%302, %c0_77, %c0_78], %305 {strides = array<i32>} : memref<8x16x32xbf16, #tpu.memory_space<vmem>>, vector<1x16x32xbf16>,
    } else {
    }
    %c6_i32 = arith.constant 6 : i32
    %222 = arith.index_cast %c6_i32 : i32 to index
    %c0_56 = arith.constant 0 : index
    %c0_57 = arith.constant 0 : index
    %223 = vector.load %arg11[%222, %c0_56, %c0_57] : memref<8x16x128xf32, #tpu.memory_space<vmem>>, vector<1x16x128xf32>
    %224 = vector.shape_cast %223 : vector<1x16x128xf32> to vector<16x128xf32>
    %225 = arith.truncf %219 : vector<16x32xf32> to vector<16x32xbf16>
    %cst_58 = arith.constant dense<0.000000e+00> : vector<16x128xf32>
    %226 = tpu.matmul %225, %16, %cst_58 {dimension_numbers = #tpu.dot_dimension_numbers<[1], [0], [0], [1], [0, 0, 1, 1], [], []>} : vector<16x32xbf16>, vector<32x128xbf16>, vector<16x128xf32> -> vector<16x128xf32>
    %227 = arith.addf %224, %226 : vector<16x128xf32>
    %228 = vector.extract_strided_slice %227 {offsets = [0, 0], sizes = [16, 32], strides = [1, 1]} : vector<16x128xf32> to vector<16x32xf32>
    %229 = arith.negf %228 : vector<16x32xf32>
    %230 = math.exp %229 : vector<16x32xf32>
    %cst_59 = arith.constant 1.000000e+00 : f32
    %231 = vector.broadcast %cst_59 : f32 to vector<16x32xf32>
    %232 = arith.addf %231, %230 : vector<16x32xf32>
    %233 = arith.divf %231, %232 : vector<16x32xf32>
    %234 = vector.extract_strided_slice %227 {offsets = [0, 32], sizes = [16, 32], strides = [1, 1]} : vector<16x128xf32> to vector<16x32xf32>
    %235 = arith.negf %234 : vector<16x32xf32>
    %236 = math.exp %235 : vector<16x32xf32>
    %cst_60 = arith.constant 1.000000e+00 : f32
    %237 = vector.broadcast %cst_60 : f32 to vector<16x32xf32>
    %238 = arith.addf %237, %236 : vector<16x32xf32>
    %239 = arith.divf %237, %238 : vector<16x32xf32>
    %240 = vector.extract_strided_slice %227 {offsets = [0, 64], sizes = [16, 32], strides = [1, 1]} : vector<16x128xf32> to vector<16x32xf32>
    %241 = math.tanh %240 : vector<16x32xf32>
    %242 = vector.extract_strided_slice %227 {offsets = [0, 96], sizes = [16, 32], strides = [1, 1]} : vector<16x128xf32> to vector<16x32xf32>
    %243 = arith.negf %242 : vector<16x32xf32>
    %244 = math.exp %243 : vector<16x32xf32>
    %cst_61 = arith.constant 1.000000e+00 : f32
    %245 = vector.broadcast %cst_61 : f32 to vector<16x32xf32>
    %246 = arith.addf %245, %244 : vector<16x32xf32>
    %247 = arith.divf %245, %246 : vector<16x32xf32>
    %248 = arith.mulf %239, %217 : vector<16x32xf32>
    %249 = arith.mulf %233, %241 : vector<16x32xf32>
    %250 = arith.addf %248, %249 : vector<16x32xf32>
    %251 = math.tanh %250 : vector<16x32xf32>
    %252 = arith.mulf %247, %251 : vector<16x32xf32>
    %253 = arith.extui %17 : i1 to i32
    %c0_i32_62 = arith.constant 0 : i32
    %254 = arith.cmpi ne, %253, %c0_i32_62 : i32
    scf.if %254 {
      %301 = arith.truncf %252 : vector<16x32xf32> to vector<16x32xbf16>
      %302 = arith.index_cast %c6_i32 : i32 to index
      %c0_77 = arith.constant 0 : index
      %c0_78 = arith.constant 0 : index
      %303 = vector.load %arg10[%302, %c0_77, %c0_78] : memref<8x16x32xbf16, #tpu.memory_space<vmem>>, vector<1x16x32xbf16>
      %304 = vector.shape_cast %303 : vector<1x16x32xbf16> to vector<16x32xbf16>
      %305 = vector.shape_cast %301 : vector<16x32xbf16> to vector<1x16x32xbf16>
      tpu.vector_store %arg10[%302, %c0_77, %c0_78], %305 {strides = array<i32>} : memref<8x16x32xbf16, #tpu.memory_space<vmem>>, vector<1x16x32xbf16>,
    } else {
    }
    %c7_i32 = arith.constant 7 : i32
    %255 = arith.index_cast %c7_i32 : i32 to index
    %c0_63 = arith.constant 0 : index
    %c0_64 = arith.constant 0 : index
    %256 = vector.load %arg11[%255, %c0_63, %c0_64] : memref<8x16x128xf32, #tpu.memory_space<vmem>>, vector<1x16x128xf32>
    %257 = vector.shape_cast %256 : vector<1x16x128xf32> to vector<16x128xf32>
    %258 = arith.truncf %252 : vector<16x32xf32> to vector<16x32xbf16>
    %cst_65 = arith.constant dense<0.000000e+00> : vector<16x128xf32>
    %259 = tpu.matmul %258, %16, %cst_65 {dimension_numbers = #tpu.dot_dimension_numbers<[1], [0], [0], [1], [0, 0, 1, 1], [], []>} : vector<16x32xbf16>, vector<32x128xbf16>, vector<16x128xf32> -> vector<16x128xf32>
    %260 = arith.addf %257, %259 : vector<16x128xf32>
    %261 = vector.extract_strided_slice %260 {offsets = [0, 0], sizes = [16, 32], strides = [1, 1]} : vector<16x128xf32> to vector<16x32xf32>
    %262 = arith.negf %261 : vector<16x32xf32>
    %263 = math.exp %262 : vector<16x32xf32>
    %cst_66 = arith.constant 1.000000e+00 : f32
    %264 = vector.broadcast %cst_66 : f32 to vector<16x32xf32>
    %265 = arith.addf %264, %263 : vector<16x32xf32>
    %266 = arith.divf %264, %265 : vector<16x32xf32>
    %267 = vector.extract_strided_slice %260 {offsets = [0, 32], sizes = [16, 32], strides = [1, 1]} : vector<16x128xf32> to vector<16x32xf32>
    %268 = arith.negf %267 : vector<16x32xf32>
    %269 = math.exp %268 : vector<16x32xf32>
    %cst_67 = arith.constant 1.000000e+00 : f32
    %270 = vector.broadcast %cst_67 : f32 to vector<16x32xf32>
    %271 = arith.addf %270, %269 : vector<16x32xf32>
    %272 = arith.divf %270, %271 : vector<16x32xf32>
    %273 = vector.extract_strided_slice %260 {offsets = [0, 64], sizes = [16, 32], strides = [1, 1]} : vector<16x128xf32> to vector<16x32xf32>
    %274 = math.tanh %273 : vector<16x32xf32>
    %275 = vector.extract_strided_slice %260 {offsets = [0, 96], sizes = [16, 32], strides = [1, 1]} : vector<16x128xf32> to vector<16x32xf32>
    %276 = arith.negf %275 : vector<16x32xf32>
    %277 = math.exp %276 : vector<16x32xf32>
    %cst_68 = arith.constant 1.000000e+00 : f32
    %278 = vector.broadcast %cst_68 : f32 to vector<16x32xf32>
    %279 = arith.addf %278, %277 : vector<16x32xf32>
    %280 = arith.divf %278, %279 : vector<16x32xf32>
    %281 = arith.mulf %272, %250 : vector<16x32xf32>
    %282 = arith.mulf %266, %274 : vector<16x32xf32>
    %283 = arith.addf %281, %282 : vector<16x32xf32>
    %284 = math.tanh %283 : vector<16x32xf32>
    %285 = arith.mulf %280, %284 : vector<16x32xf32>
    %286 = arith.extui %17 : i1 to i32
    %c0_i32_69 = arith.constant 0 : i32
    %287 = arith.cmpi ne, %286, %c0_i32_69 : i32
    scf.if %287 {
      %301 = arith.truncf %285 : vector<16x32xf32> to vector<16x32xbf16>
      %302 = arith.index_cast %c7_i32 : i32 to index
      %c0_77 = arith.constant 0 : index
      %c0_78 = arith.constant 0 : index
      %303 = vector.load %arg10[%302, %c0_77, %c0_78] : memref<8x16x32xbf16, #tpu.memory_space<vmem>>, vector<1x16x32xbf16>
      %304 = vector.shape_cast %303 : vector<1x16x32xbf16> to vector<16x32xbf16>
      %305 = vector.shape_cast %301 : vector<16x32xbf16> to vector<1x16x32xbf16>
      tpu.vector_store %arg10[%302, %c0_77, %c0_78], %305 {strides = array<i32>} : memref<8x16x32xbf16, #tpu.memory_space<vmem>>, vector<1x16x32xbf16>,
    } else {
    }
    %c8_i32 = arith.constant 8 : i32
    %288 = arith.index_cast %arg1 : i32 to index
    %c0_70 = arith.constant 0 : index
    %c0_71 = arith.constant 0 : index
    %289 = vector.load %arg12[%288, %c0_70, %c0_71] : memref<2x16x32xf32, #tpu.memory_space<vmem>>, vector<1x16x32xf32>
    %290 = vector.shape_cast %289 : vector<1x16x32xf32> to vector<16x32xf32>
    %291 = vector.shape_cast %285 : vector<16x32xf32> to vector<1x16x32xf32>
    tpu.vector_store %arg12[%288, %c0_70, %c0_71], %291 {strides = array<i32>} : memref<2x16x32xf32, #tpu.memory_space<vmem>>, vector<1x16x32xf32>,
    %292 = arith.index_cast %arg1 : i32 to index
    %c0_72 = arith.constant 0 : index
    %c0_73 = arith.constant 0 : index
    %293 = vector.load %arg13[%292, %c0_72, %c0_73] : memref<2x16x32xf32, #tpu.memory_space<vmem>>, vector<1x16x32xf32>
    %294 = vector.shape_cast %293 : vector<1x16x32xf32> to vector<16x32xf32>
    %295 = vector.shape_cast %283 : vector<16x32xf32> to vector<1x16x32xf32>
    tpu.vector_store %arg13[%292, %c0_72, %c0_73], %295 {strides = array<i32>} : memref<2x16x32xf32, #tpu.memory_space<vmem>>, vector<1x16x32xf32>,
    %c1_i32_74 = arith.constant 1 : i32
    %296 = arith.cmpi eq, %arg1, %c1_i32_74 : i32
    %c0_i32_75 = arith.constant 0 : i32
    %297 = arith.cmpi eq, %arg0, %c0_i32_75 : i32
    %298 = arith.andi %296, %297 : i1
    %299 = arith.extui %298 : i1 to i32
    %c0_i32_76 = arith.constant 0 : i32
    %300 = arith.cmpi ne, %299, %c0_i32_76 : i32
    scf.if %300 {
      %301 = arith.truncf %285 : vector<16x32xf32> to vector<16x32xbf16>
      %c0_77 = arith.constant 0 : index
      %c0_78 = arith.constant 0 : index
      %302 = vector.load %arg7[%c0_77, %c0_78] : memref<32x128xbf16, #tpu.memory_space<vmem>>, vector<32x128xbf16>
      %cst_79 = arith.constant dense<0.000000e+00> : vector<16x128xf32>
      %303 = tpu.matmul %301, %302, %cst_79 {dimension_numbers = #tpu.dot_dimension_numbers<[1], [0], [0], [1], [0, 0, 1, 1], [], []>} : vector<16x32xbf16>, vector<32x128xbf16>, vector<16x128xf32> -> vector<16x128xf32>
      %c0_80 = arith.constant 0 : index
      %c0_81 = arith.constant 0 : index
      %304 = vector.load %arg8[%c0_80, %c0_81] : memref<1x128xf32, #tpu.memory_space<vmem>>, vector<1x128xf32>
      %305 = vector.broadcast %304 : vector<1x128xf32> to vector<16x128xf32>
      %306 = arith.addf %303, %305 : vector<16x128xf32>
      %c0_82 = arith.constant 0 : index
      %c0_83 = arith.constant 0 : index
      %307 = vector.load %arg9[%c0_82, %c0_83] : memref<16x128xf32, #tpu.memory_space<vmem>>, vector<16x128xf32>
      tpu.vector_store %arg9[%c0_82, %c0_83], %306 {strides = array<i32>} : memref<16x128xf32, #tpu.memory_space<vmem>>, vector<16x128xf32>,
    } else {
    }
    return
  }
  func.func @transform_0(%arg0: i32, %arg1: i32) -> (i32, i32, i32) {
    %c0_i32 = arith.constant 0 : i32
    %c0_i32_0 = arith.constant 0 : i32
    %c0_i32_1 = arith.constant 0 : i32
    return %arg0, %c0_i32, %c0_i32_0 : i32, i32, i32
  }
  func.func @transform_1(%arg0: i32, %arg1: i32) -> (i32, i32) {
    %c0_i32 = arith.constant 0 : i32
    %c0_i32_0 = arith.constant 0 : i32
    %c0_i32_1 = arith.constant 0 : i32
    return %c0_i32, %c0_i32_0 : i32, i32
  }
  func.func @transform_2(%arg0: i32, %arg1: i32) -> (i32, i32, i32) {
    %c0_i32 = arith.constant 0 : i32
    %c0_i32_0 = arith.constant 0 : i32
    %c0_i32_1 = arith.constant 0 : i32
    %c0_i32_2 = arith.constant 0 : i32
    return %c0_i32, %c0_i32_0, %c0_i32_1 : i32, i32, i32
  }
  func.func @transform_3(%arg0: i32, %arg1: i32) -> (i32, i32, i32) {
    %c0_i32 = arith.constant 0 : i32
    %c0_i32_0 = arith.constant 0 : i32
    %c0_i32_1 = arith.constant 0 : i32
    %c0_i32_2 = arith.constant 0 : i32
    return %c0_i32, %c0_i32_0, %c0_i32_1 : i32, i32, i32
  }
  func.func @transform_4(%arg0: i32, %arg1: i32) -> (i32, i32, i32) {
    %c0_i32 = arith.constant 0 : i32
    %c0_i32_0 = arith.constant 0 : i32
    %c0_i32_1 = arith.constant 0 : i32
    %c0_i32_2 = arith.constant 0 : i32
    return %c0_i32, %c0_i32_0, %c0_i32_1 : i32, i32, i32
  }
  func.func @transform_5(%arg0: i32, %arg1: i32) -> (i32, i32) {
    %c0_i32 = arith.constant 0 : i32
    %c0_i32_0 = arith.constant 0 : i32
    %c0_i32_1 = arith.constant 0 : i32
    return %c0_i32, %c0_i32_0 : i32, i32
  }
  func.func @transform_6(%arg0: i32, %arg1: i32) -> (i32, i32) {
    %c0_i32 = arith.constant 0 : i32
    %c0_i32_0 = arith.constant 0 : i32
    %c0_i32_1 = arith.constant 0 : i32
    return %c0_i32, %c0_i32_0 : i32, i32
  }
  func.func @transform_7(%arg0: i32, %arg1: i32) -> (i32, i32) {
    %c0_i32 = arith.constant 0 : i32
    %c0_i32_0 = arith.constant 0 : i32
    %c0_i32_1 = arith.constant 0 : i32
    return %c0_i32, %c0_i32_0 : i32, i32
  }
}

</mosaic_0001>

<llo_original>
// kernel: _forward_impl.1
$region0: #{_forward_impl.1}
  #allocation0 [shape = 'u32[]', space=smem, size = 0x4, offset = 0x4, fixed_abs, tag = 'smem constant byte address 0x4 - core index']
  #allocation1 [shape = 'u32[144,128]{1,0:T(1,128)}', space=vmem, size = 0x12000, scoped, tag = 'internal scratch']
  #allocation2 [shape = 'bf16[8,16,32]{2,1,0:T(16,128)(2,1)}', space=vmem, size = 0x8000, scoped, tag = 'scratch operand']
  #allocation3 [shape = 'f32[8,16,128]{2,1,0:T(8,128)}', space=vmem, size = 0x10000, scoped, tag = 'scratch operand']
  #allocation4 [shape = 'f32[2,16,32]{2,1,0:T(8,128)}', space=vmem, size = 0x4000, scoped, tag = 'scratch operand']
  #allocation5 [shape = 'f32[2,16,32]{2,1,0:T(8,128)}', space=vmem, size = 0x4000, scoped, tag = 'scratch operand']
  %s0 = inlined_call_operand.vmem [shape: bf16[8,16,16], index: 0, kind: input, shape index: {}]
  %s1 = inlined_call_operand.vmem [shape: bf16[16,128], index: 1, kind: input, shape index: {}]
  %s2 = inlined_call_operand.vmem [shape: bf16[2,32,128], index: 2, kind: input, shape index: {}]
  %s3 = inlined_call_operand.vmem [shape: bf16[2,32,128], index: 3, kind: input, shape index: {}]
  %s4 = inlined_call_operand.vmem [shape: f32[2,1,128], index: 4, kind: input, shape index: {}]
  %s5 = inlined_call_operand.vmem [shape: bf16[32,128], index: 5, kind: input, shape index: {}]
  %s6 = inlined_call_operand.vmem [shape: f32[1,128], index: 6, kind: input, shape index: {}]
  %s7 = inlined_call_operand.vmem [shape: f32[16,128], index: 7, kind: output, shape index: {}]
  %s8 = sld [smem:[#allocation0]]
  $region113: #{_forward_impl.1} parent=0
    _
  %s10 = ssub.s32 1, %s8
  %s11 = scalar_select 0, %s10, %s8
  loop: start=0, step=1, limit=4
  $region2: #{_forward_impl.1} parent=0 // loop_pre_header
    _
  $region3: #{_forward_impl.1} parent=0 // loop_header
    %s13 = sphi 0, %s17
    %p14 = scmp.ge.s32.totalorder %s13, 4
    %s20 = sphi 0, %s32
    %s21 = sphi 0, %s28
    %s22 = sphi 0, %s20
    %s23 = sphi 0, %s21
    %s24 = sphi 0, %s22
    %s25 = sphi 0, %s23
    %s35 = sphi 0, %s37
    %s38 = sphi 0, %s35
    %s39 = sphi 0, %s38
    %s55 = sphi 0, %s39
    %s59 = sphi 0, %s59
    %s61 = sphi 0, %s59
    %s62 = sphi 0, %s61
    %s76 = sphi 0, %s62
    %s80 = sphi 0, %s80
    %s82 = sphi 0, %s80
    %s83 = sphi 0, %s82
    %s97 = sphi 0, %s83
    %s101 = sphi 0, %s101
    %s103 = sphi 0, %s101
    %s104 = sphi 0, %s103
    %s118 = sphi 0, %s104
    %s122 = sphi 0, %s122
    %s124 = sphi 0, %s122
    %s125 = sphi 0, %s124
    %s139 = sphi 0, %s125
    %s143 = sphi 0, %s143
    %s145 = sphi 0, %s143
    %s146 = sphi 0, %s145
    %s160 = sphi 0, %s146
    %s164 = sphi 0, %s164
    %s166 = sphi 0, %s164
    %s167 = sphi 0, %s166
    %s181 = sphi 0, %s167
    %s185 = sphi 0, %s185
    %s187 = sphi 0, %s185
    %s188 = sphi 0, %s187
    %s202 = sphi 0, %s188
  $region4: #{_forward_impl.1} parent=0 // loop_header_branch
    %16 = sbr.rel (%p14) target = $region8
  $region5: #{_forward_impl.1} parent=0 // loop_body
    %s18 = ssub.s32 %s13, 1
    %s19 = ssub.s32 %s13, 2
    %s26 = sadd.s32 1, %s21
    %p27 = scmp.ge.s32.totalorder %s26, 2
    %s28 = scalar_select %p27, 0, %s26
    %s29 = sadd.s32 1, %s20
    %s30 = scalar_select %p27, %s29, %s20
    %p31 = scmp.ge.s32.totalorder %s30, 1
    %s32 = scalar_select %p31, 0, %s30
    %s33 = ssub.s32 %s20, %s32
    %p34 = scmp.eq.s32.totalorder %s33, 0
    %s36 = sadd.s32 %s35, 1
    %s37 = scalar_select %p34, %s35, %s36
    %p40 = pneg %p34
    %p41 = scmp.eq.s32.totalorder %s13, 1
    %p42 = por %p40, %p41
    %p43 = scmp.ne.s32.totalorder %s35, %s38
    %p44 = scmp.eq.s32.totalorder %s13, 0
    %p45 = por %p43, %p44
    %p46 = scmp.ne.s32.totalorder %s35, %s38
    %p47 = scmp.eq.s32.totalorder %s18, 1
    %p48 = por %p46, %p47
    %p49 = scmp.ne.s32.totalorder %s38, %s39
    %p50 = scmp.eq.s32.totalorder %s18, 0
    %p51 = por %p49, %p50
    %p52 = scmp.ne.s32.totalorder %s38, %s39
    %p53 = scmp.eq.s32.totalorder %s19, 1
    %p54 = por %p52, %p53
    %p56 = scmp.ne.s32.totalorder %s39, %s55
    %p57 = scmp.eq.s32.totalorder %s19, 0
    %p58 = por %p56, %p57
    %s60 = sadd.s32 %s59, 1
    %p63 = scmp.eq.s32.totalorder %s13, 1
    %p64 = scmp.ne.s32.totalorder %s59, %s61
    %p65 = scmp.eq.s32.totalorder %s13, 0
    %p66 = por %p64, %p65
    %p67 = scmp.ne.s32.totalorder %s59, %s61
    %p68 = scmp.eq.s32.totalorder %s18, 1
    %p69 = por %p67, %p68
    %p70 = scmp.ne.s32.totalorder %s61, %s62
    %p71 = scmp.eq.s32.totalorder %s18, 0
    %p72 = por %p70, %p71
    %p73 = scmp.ne.s32.totalorder %s61, %s62
    %p74 = scmp.eq.s32.totalorder %s19, 1
    %p75 = por %p73, %p74
    %p77 = scmp.ne.s32.totalorder %s62, %s76
    %p78 = scmp.eq.s32.totalorder %s19, 0
    %p79 = por %p77, %p78
    %s81 = sadd.s32 %s80, 1
    %p84 = scmp.eq.s32.totalorder %s13, 1
    %p85 = scmp.ne.s32.totalorder %s80, %s82
    %p86 = scmp.eq.s32.totalorder %s13, 0
    %p87 = por %p85, %p86
    %p88 = scmp.ne.s32.totalorder %s80, %s82
    %p89 = scmp.eq.s32.totalorder %s18, 1
    %p90 = por %p88, %p89
    %p91 = scmp.ne.s32.totalorder %s82, %s83
    %p92 = scmp.eq.s32.totalorder %s18, 0
    %p93 = por %p91, %p92
    %p94 = scmp.ne.s32.totalorder %s82, %s83
    %p95 = scmp.eq.s32.totalorder %s19, 1
    %p96 = por %p94, %p95
    %p98 = scmp.ne.s32.totalorder %s83, %s97
    %p99 = scmp.eq.s32.totalorder %s19, 0
    %p100 = por %p98, %p99
    %s102 = sadd.s32 %s101, 1
    %p105 = scmp.eq.s32.totalorder %s13, 1
    %p106 = scmp.ne.s32.totalorder %s101, %s103
    %p107 = scmp.eq.s32.totalorder %s13, 0
    %p108 = por %p106, %p107
    %p109 = scmp.ne.s32.totalorder %s101, %s103
    %p110 = scmp.eq.s32.totalorder %s18, 1
    %p111 = por %p109, %p110
    %p112 = scmp.ne.s32.totalorder %s103, %s104
    %p113 = scmp.eq.s32.totalorder %s18, 0
    %p114 = por %p112, %p113
    %p115 = scmp.ne.s32.totalorder %s103, %s104
    %p116 = scmp.eq.s32.totalorder %s19, 1
    %p117 = por %p115, %p116
    %p119 = scmp.ne.s32.totalorder %s104, %s118
    %p120 = scmp.eq.s32.totalorder %s19, 0
    %p121 = por %p119, %p120
    %s123 = sadd.s32 %s122, 1
    %p126 = scmp.eq.s32.totalorder %s13, 1
    %p127 = scmp.ne.s32.totalorder %s122, %s124
    %p128 = scmp.eq.s32.totalorder %s13, 0
    %p129 = por %p127, %p128
    %p130 = scmp.ne.s32.totalorder %s122, %s124
    %p131 = scmp.eq.s32.totalorder %s18, 1
    %p132 = por %p130, %p131
    %p133 = scmp.ne.s32.totalorder %s124, %s125
    %p134 = scmp.eq.s32.totalorder %s18, 0
    %p135 = por %p133, %p134
    %p136 = scmp.ne.s32.totalorder %s124, %s125
    %p137 = scmp.eq.s32.totalorder %s19, 1
    %p138 = por %p136, %p137
    %p140 = scmp.ne.s32.totalorder %s125, %s139
    %p141 = scmp.eq.s32.totalorder %s19, 0
    %p142 = por %p140, %p141
    %s144 = sadd.s32 %s143, 1
    %p147 = scmp.eq.s32.totalorder %s13, 1
    %p148 = scmp.ne.s32.totalorder %s143, %s145
    %p149 = scmp.eq.s32.totalorder %s13, 0
    %p150 = por %p148, %p149
    %p151 = scmp.ne.s32.totalorder %s143, %s145
    %p152 = scmp.eq.s32.totalorder %s18, 1
    %p153 = por %p151, %p152
    %p154 = scmp.ne.s32.totalorder %s145, %s146
    %p155 = scmp.eq.s32.totalorder %s18, 0
    %p156 = por %p154, %p155
    %p157 = scmp.ne.s32.totalorder %s145, %s146
    %p158 = scmp.eq.s32.totalorder %s19, 1
    %p159 = por %p157, %p158
    %p161 = scmp.ne.s32.totalorder %s146, %s160
    %p162 = scmp.eq.s32.totalorder %s19, 0
    %p163 = por %p161, %p162
    %s165 = sadd.s32 %s164, 1
    %p168 = scmp.eq.s32.totalorder %s13, 1
    %p169 = scmp.ne.s32.totalorder %s164, %s166
    %p170 = scmp.eq.s32.totalorder %s13, 0
    %p171 = por %p169, %p170
    %p172 = scmp.ne.s32.totalorder %s164, %s166
    %p173 = scmp.eq.s32.totalorder %s18, 1
    %p174 = por %p172, %p173
    %p175 = scmp.ne.s32.totalorder %s166, %s167
    %p176 = scmp.eq.s32.totalorder %s18, 0
    %p177 = por %p175, %p176
    %p178 = scmp.ne.s32.totalorder %s166, %s167
    %p179 = scmp.eq.s32.totalorder %s19, 1
    %p180 = por %p178, %p179
    %p182 = scmp.ne.s32.totalorder %s167, %s181
    %p183 = scmp.eq.s32.totalorder %s19, 0
    %p184 = por %p182, %p183
    %s186 = sadd.s32 %s185, 1
    %p189 = scmp.eq.s32.totalorder %s13, 1
    %p190 = scmp.ne.s32.totalorder %s185, %s187
    %p191 = scmp.eq.s32.totalorder %s13, 0
    %p192 = por %p190, %p191
    %p193 = scmp.ne.s32.totalorder %s185, %s187
    %p194 = scmp.eq.s32.totalorder %s18, 1
    %p195 = por %p193, %p194
    %p196 = scmp.ne.s32.totalorder %s187, %s188
    %p197 = scmp.eq.s32.totalorder %s18, 0
    %p198 = por %p196, %p197
    %p199 = scmp.ne.s32.totalorder %s187, %s188
    %p200 = scmp.eq.s32.totalorder %s19, 1
    %p201 = por %p199, %p200
    %p203 = scmp.ne.s32.totalorder %s188, %s202
    %p204 = scmp.eq.s32.totalorder %s19, 0
    %p205 = por %p203, %p204
    %p206 = scmp.le.s32.totalorder 1, %s13
    %p207 = scmp.lt.s32.totalorder %s13, 3
    %p208 = pnand %p206, %p207
    %p209 = pneg %p208
    // Predicated region
    $region9: #{_forward_impl.1} parent=5 // pred_check
      _
    $region10: #{_forward_impl.1} parent=5 // pred_check_branch
      %211 = sbr.rel (%p208) target = $region12
    $region11: #{_forward_impl.1} parent=5 // pred_region
      %s212 = ssub.s32 %s13, 1
      // Predicated region
      $region13: #{_forward_impl.1} parent=11 // pred_check
        %p213 = pneg %p51
      $region14: #{_forward_impl.1} parent=11 // pred_check_branch
        %215 = sbr.rel (%p213) target = $region16
      $region15: #{_forward_impl.1} parent=11 // pred_region
        %s216 = smul.u32 8, %s22
        %p217 = scmp.lt.s32.totalorder %s216, 7
        %s218 = scalar_select %p217, %s216, 7
        %s219 = smul.addr %s218, 2
        %s220 = smul.addr %s219, 4
        %s221 = scalar_lea.vmem %s0, %s220
        %s222 = smul.u32 8, %s22
      $region16: #{_forward_impl.1} parent=11 // pred_fallthru
        _
      // Predicated region
      $region17: #{_forward_impl.1} parent=11 // pred_check
        %p223 = pneg %p72
      $region18: #{_forward_impl.1} parent=11 // pred_check_branch
        %225 = sbr.rel (%p223) target = $region20
      $region19: #{_forward_impl.1} parent=11 // pred_region
        _
      $region20: #{_forward_impl.1} parent=11 // pred_fallthru
        _
      // Predicated region
      $region21: #{_forward_impl.1} parent=11 // pred_check
        %p226 = pneg %p93
      $region22: #{_forward_impl.1} parent=11 // pred_check_branch
        %228 = sbr.rel (%p226) target = $region24
      $region23: #{_forward_impl.1} parent=11 // pred_region
        _
      $region24: #{_forward_impl.1} parent=11 // pred_fallthru
        _
      // Predicated region
      $region25: #{_forward_impl.1} parent=11 // pred_check
        %p229 = pneg %p114
      $region26: #{_forward_impl.1} parent=11 // pred_check_branch
        %231 = sbr.rel (%p229) target = $region28
      $region27: #{_forward_impl.1} parent=11 // pred_region
        _
      $region28: #{_forward_impl.1} parent=11 // pred_fallthru
        _
      // Predicated region
      $region29: #{_forward_impl.1} parent=11 // pred_check
        %p232 = pneg %p135
      $region30: #{_forward_impl.1} parent=11 // pred_check_branch
        %234 = sbr.rel (%p232) target = $region32
      $region31: #{_forward_impl.1} parent=11 // pred_region
        _
      $region32: #{_forward_impl.1} parent=11 // pred_fallthru
        _
      // Predicated region
      $region33: #{_forward_impl.1} parent=11 // pred_check
        %p235 = pneg %p156
      $region34: #{_forward_impl.1} parent=11 // pred_check_branch
        %237 = sbr.rel (%p235) target = $region36
      $region35: #{_forward_impl.1} parent=11 // pred_region
        _
      $region36: #{_forward_impl.1} parent=11 // pred_fallthru
        _
      // Predicated region
      $region37: #{_forward_impl.1} parent=11 // pred_check
        %p238 = pneg %p177
      $region38: #{_forward_impl.1} parent=11 // pred_check_branch
        %240 = sbr.rel (%p238) target = $region40
      $region39: #{_forward_impl.1} parent=11 // pred_region
        _
      $region40: #{_forward_impl.1} parent=11 // pred_fallthru
        _
    $region12: #{_forward_impl.1} parent=5 // pred_fallthru
      _
    %p241 = scmp.lt.s32.totalorder %s13, 2
    // Predicated region
    $region41: #{_forward_impl.1} parent=5 // pred_check
      %p242 = pneg %p241
    $region42: #{_forward_impl.1} parent=5 // pred_check_branch
      %244 = sbr.rel (%p242) target = $region44
    $region43: #{_forward_impl.1} parent=5 // pred_region
      _
    $region44: #{_forward_impl.1} parent=5 // pred_fallthru
      _
    %p245 = scmp.le.s32.totalorder 1, %s13
    %p246 = scmp.lt.s32.totalorder %s13, 3
    %p247 = pnand %p245, %p246
    %p248 = pneg %p247
    // Predicated region
    $region45: #{_forward_impl.1} parent=5 // pred_check
      _
    $region46: #{_forward_impl.1} parent=5 // pred_check_branch
      %250 = sbr.rel (%p247) target = $region48
    $region47: #{_forward_impl.1} parent=5 // pred_region
      %s251 = ssub.s32 %s13, 1
      %s252 = smul.u32 8, %s22
      %p253 = scmp.lt.s32.totalorder %s252, 7
      %s254 = scalar_select %p253, %s252, 7
      %s255 = smul.addr %s254, 2
      %s256 = smul.addr %s255, 4
      %s257 = scalar_lea.vmem %s0, %s256
      %p258 = pneg %p51
      %p259 = pneg %p48
      %p260 = pneg %p72
      %p261 = pneg %p69
      %p262 = pneg %p93
      %p263 = pneg %p90
      %p264 = pneg %p114
      %p265 = pneg %p111
      %p266 = pneg %p135
      %p267 = pneg %p132
      %p268 = pneg %p156
      %p269 = pneg %p153
      %p270 = pneg %p177
      %p271 = pneg %p174
      %p272 = pneg %p198
      %p273 = pneg %p195
      %s274 = smul.u32 8, %s22
      %p275 = scmp.lt.s32.totalorder %s274, 7
      %s276 = scalar_select %p275, %s274, 7
      %s277 = smul.addr %s276, 2
      %s278 = smul.addr %s277, 4
      %s279 = scalar_lea.vmem %s0, %s278
      %s280 = smul.u32 8, %s22
      %p282 = scmp.eq.s32.totalorder %s22, 0
      %p283 = scmp.eq.s32.totalorder %s23, 0
      %p284 = pnand %p282, %p283
      %p285 = pneg %p284
      // Predicated region
      $region49: #{_forward_impl.1} parent=47 // pred_check
        _
      $region50: #{_forward_impl.1} parent=47 // pred_check_branch
        %287 = sbr.rel (%p284) target = $region52
      $region51: #{_forward_impl.1} parent=47 // pred_region
        %288 = vst [vmem:[%s7] sm:$0xff] 0.0
        %289 = vst [vmem:[%s7 + $0x8] sm:$0xff] 0.0
      $region52: #{_forward_impl.1} parent=47 // pred_fallthru
        _
      // Predicated region
      $region53: #{_forward_impl.1} parent=47 // pred_check
        %p290 = pneg %p282
      $region54: #{_forward_impl.1} parent=47 // pred_check_branch
        %292 = sbr.rel (%p290) target = $region56
      $region55: #{_forward_impl.1} parent=47 // pred_region
        %s293 = smul.u32 %s23, 16
        %s294 = scalar_lea.vmem [#allocation4], %s293
        %vm295 = vcmask 261120
        %296 = vst.msk [vmem:[%s294] sm:$0xff] %vm295, 0.0
        %297 = vst.msk [vmem:[%s294 + $0x8] sm:$0xff] %vm295, 0.0
        %s298 = scalar_lea.vmem [#allocation5], %s293
        %299 = vst.msk [vmem:[%s298] sm:$0xff] %vm295, 0.0
        %300 = vst.msk [vmem:[%s298 + $0x8] sm:$0xff] %vm295, 0.0
      $region56: #{_forward_impl.1} parent=47 // pred_fallthru
        _
      // Predicated region
      $region57: #{_forward_impl.1} parent=47 // pred_check
        %p301 = pneg %p283
      $region58: #{_forward_impl.1} parent=47 // pred_check_branch
        %303 = sbr.rel (%p301) target = $region60
      $region59: #{_forward_impl.1} parent=47 // pred_region
        %v304 = vld [vmem:[%s279] sm:$0xf]
        %v305 = vld [vmem:[%s279 + $0x4] sm:$0xf]
        %v306 = vld [vmem:[%s279 + $0x8] sm:$0xf]
        %v307 = vld [vmem:[%s279 + $0xc] sm:$0xf]
        %v308 = vld [vmem:[%s279 + $0x10] sm:$0xf]
        %v309 = vld [vmem:[%s279 + $0x14] sm:$0xf]
        %v310 = vld [vmem:[%s279 + $0x18] sm:$0xf]
        %v311 = vld [vmem:[%s279 + $0x1c] sm:$0xf]
        %v312 = vld [vmem:[%s279 + $0x20] sm:$0xf]
        %v313 = vld [vmem:[%s279 + $0x24] sm:$0xf]
        %v314 = vld [vmem:[%s279 + $0x28] sm:$0xf]
        %v315 = vld [vmem:[%s279 + $0x2c] sm:$0xf]
        %v316 = vld [vmem:[%s279 + $0x30] sm:$0xf]
        %v317 = vld [vmem:[%s279 + $0x34] sm:$0xf]
        %v318 = vld [vmem:[%s279 + $0x38] sm:$0xf]
        %v319 = vld [vmem:[%s279 + $0x3c] sm:$0xf]
        %v320 = vld [vmem:[%s1] sm:$0xf]
        %v321 = vld [vmem:[%s1 + $0x4] sm:$0xf]
        %v338 = vunpack.c.l.b16 %v304
        %v339 = vunpack.c.l.b16 %v305
        %v340 = vunpack.c.l.b16 %v306
        %v341 = vunpack.c.l.b16 %v307
        %v342 = vunpack.c.l.b16 %v308
        %v343 = vunpack.c.l.b16 %v309
        %v344 = vunpack.c.l.b16 %v310
        %v345 = vunpack.c.l.b16 %v311
        %v346 = vunpack.c.l.b16 %v312
        %v347 = vunpack.c.l.b16 %v313
        %v348 = vunpack.c.l.b16 %v314
        %v349 = vunpack.c.l.b16 %v315
        %v350 = vunpack.c.l.b16 %v316
        %v351 = vunpack.c.l.b16 %v317
        %v352 = vunpack.c.l.b16 %v318
        %v353 = vunpack.c.l.b16 %v319
        %v354 = vpack.c.b16 %v339, %v338
        %v355 = vpack.c.b16 %v341, %v340
        %v356 = vpack.c.b16 %v343, %v342
        %v357 = vpack.c.b16 %v345, %v344
        %v358 = vpack.c.b16 %v347, %v346
        %v359 = vpack.c.b16 %v349, %v348
        %v360 = vpack.c.b16 %v351, %v350
        %v361 = vpack.c.b16 %v353, %v352
        %v364 = vunpack.c.l.b16 %v320
        %v365 = vunpack.c.l.b16 %v321
        %v366 = vpack.c.b16 %v365, %v364
        %vm368 = vcmask 130048
        %v370 = vsel %vm368, %v354, 0
        %v373 = vsel %vm368, %v355, 0
        %v376 = vsel %vm368, %v356, 0
        %v379 = vsel %vm368, %v357, 0
        %v382 = vsel %vm368, %v358, 0
        %v385 = vsel %vm368, %v359, 0
        %v388 = vsel %vm368, %v360, 0
        %v391 = vsel %vm368, %v361, 0
        %393 = vmatprep.subr.bf16.mxu0 0
        %394 = vmatpush1.bf16.msra.mxu0 %v366
        %395 = vmatprep.subr.bf16.mxu0 0
        %396 = vmatpush1.bf16.msra.mxu0 0
        %397 = vmatprep.subr.bf16.mxu0 0
        %398 = vmatpush1.bf16.msra.mxu0 0
        %399 = vmatprep.subr.bf16.mxu0 0
        %400 = vmatpush1.bf16.msra.mxu0 0
        %401 = vmatprep.subr.bf16.mxu0 0
        %402 = vmatpush1.bf16.msra.mxu0 0
        %403 = vmatprep.subr.bf16.mxu0 0
        %404 = vmatpush1.bf16.msra.mxu0 0
        %405 = vmatprep.subr.bf16.mxu0 0
        %406 = vmatpush1.bf16.msra.mxu0 0
        %407 = vmatprep.subr.bf16.mxu0 0
        %408 = vmatpush1.bf16.msra.mxu0 0
        %409 = vmatprep.subr.bf16.mxu0 0
        %410 = vmatpush1.bf16.msra.mxu0 0
        %411 = vmatprep.subr.bf16.mxu0 0
        %412 = vmatpush1.bf16.msra.mxu0 0
        %413 = vmatprep.subr.bf16.mxu0 0
        %414 = vmatpush1.bf16.msra.mxu0 0
        %415 = vmatprep.subr.bf16.mxu0 0
        %416 = vmatpush1.bf16.msra.mxu0 0
        %417 = vmatprep.subr.bf16.mxu0 0
        %418 = vmatpush1.bf16.msra.mxu0 0
        %419 = vmatprep.subr.bf16.mxu0 0
        %420 = vmatpush1.bf16.msra.mxu0 0
        %421 = vmatprep.subr.bf16.mxu0 0
        %422 = vmatpush1.bf16.msra.mxu0 0
        %423 = vmatprep.subr.bf16.mxu0 0
        %424 = vmatpush1.bf16.msra.mxu0 0
        %425 = vmatprep.mubr.bf16.mxu0 0
        %426 = vmatmul.mubr.bf16.gmra.mrb[0].mxu0 %v370
        %v427 = vpop.f32.mrb[0].mxu0
        %v428 = vadd.f32 0.0, %v427
        %v429 = vpop.f32.mrb[0].mxu0
        %v430 = vpop.f32.mrb[0].mxu0
        %v431 = vadd.f32 0.0, %v430
        %v432 = vpop.f32.mrb[0].mxu0
        %433 = vmatprep.mubr.bf16.mxu0 0
        %434 = vmatmul.mubr.bf16.gmra.mrb[0].mxu0 %v373
        %v435 = vpop.f32.mrb[0].mxu0
        %v436 = vadd.f32 0.0, %v435
        %v437 = vpop.f32.mrb[0].mxu0
        %v438 = vpop.f32.mrb[0].mxu0
        %v439 = vadd.f32 0.0, %v438
        %v440 = vpop.f32.mrb[0].mxu0
        %441 = vmatprep.mubr.bf16.mxu0 0
        %442 = vmatmul.mubr.bf16.gmra.mrb[0].mxu0 %v376
        %v443 = vpop.f32.mrb[0].mxu0
        %v444 = vadd.f32 0.0, %v443
        %v445 = vpop.f32.mrb[0].mxu0
        %v446 = vpop.f32.mrb[0].mxu0
        %v447 = vadd.f32 0.0, %v446
        %v448 = vpop.f32.mrb[0].mxu0
        %449 = vmatprep.mubr.bf16.mxu0 0
        %450 = vmatmul.mubr.bf16.gmra.mrb[0].mxu0 %v379
        %v451 = vpop.f32.mrb[0].mxu0
        %v452 = vadd.f32 0.0, %v451
        %v453 = vpop.f32.mrb[0].mxu0
        %v454 = vpop.f32.mrb[0].mxu0
        %v455 = vadd.f32 0.0, %v454
        %v456 = vpop.f32.mrb[0].mxu0
        %457 = vmatprep.mubr.bf16.mxu0 0
        %458 = vmatmul.mubr.bf16.gmra.mrb[0].mxu0 %v382
        %v459 = vpop.f32.mrb[0].mxu0
        %v460 = vadd.f32 0.0, %v459
        %v461 = vpop.f32.mrb[0].mxu0
        %v462 = vpop.f32.mrb[0].mxu0
        %v463 = vadd.f32 0.0, %v462
        %v464 = vpop.f32.mrb[0].mxu0
        %465 = vmatprep.mubr.bf16.mxu0 0
        %466 = vmatmul.mubr.bf16.gmra.mrb[0].mxu0 %v385
        %v467 = vpop.f32.mrb[0].mxu0
        %v468 = vadd.f32 0.0, %v467
        %v469 = vpop.f32.mrb[0].mxu0
        %v470 = vpop.f32.mrb[0].mxu0
        %v471 = vadd.f32 0.0, %v470
        %v472 = vpop.f32.mrb[0].mxu0
        %473 = vmatprep.mubr.bf16.mxu0 0
        %474 = vmatmul.mubr.bf16.gmra.mrb[0].mxu0 %v388
        %v475 = vpop.f32.mrb[0].mxu0
        %v476 = vadd.f32 0.0, %v475
        %v477 = vpop.f32.mrb[0].mxu0
        %v478 = vpop.f32.mrb[0].mxu0
        %v479 = vadd.f32 0.0, %v478
        %v480 = vpop.f32.mrb[0].mxu0
        %481 = vmatprep.mubr.bf16.mxu0 0
        %482 = vmatmul.mubr.bf16.gmra.mrb[0].mxu0 %v391
        %v483 = vpop.f32.mrb[0].mxu0
        %v484 = vadd.f32 0.0, %v483
        %v485 = vpop.f32.mrb[0].mxu0
        %v486 = vpop.f32.mrb[0].mxu0
        %v487 = vadd.f32 0.0, %v486
        %v488 = vpop.f32.mrb[0].mxu0
        %489 = vdwg.mxu0
        %s490 = scalar_lea.vmem %s4, %s23
        %v491 = vld [vmem:[%s490] sm:$0x1]
        %v493 = vlaneseq
        %v494 = vshrl.u32 %v493, 7
        %v495 = vsub.s32 0, %v494
        %v496 = vrot.slane %v491, %v495
        %v498 = vadd.f32 %v428, %v496
        %v499 = vadd.f32 %v431, %v496
        %v500 = vadd.f32 %v436, %v496
        %v501 = vadd.f32 %v439, %v496
        %v502 = vadd.f32 %v444, %v496
        %v503 = vadd.f32 %v447, %v496
        %v504 = vadd.f32 %v452, %v496
        %v505 = vadd.f32 %v455, %v496
        %v506 = vadd.f32 %v460, %v496
        %v507 = vadd.f32 %v463, %v496
        %v508 = vadd.f32 %v468, %v496
        %v509 = vadd.f32 %v471, %v496
        %v510 = vadd.f32 %v476, %v496
        %v511 = vadd.f32 %v479, %v496
        %v512 = vadd.f32 %v484, %v496
        %v513 = vadd.f32 %v487, %v496
        %514 = vst [vmem:[#allocation3] sm:$0xff] %v498
        %515 = vst [vmem:[#allocation3 + $0x8] sm:$0xff] %v499
        %516 = vst [vmem:[#allocation3 + $0x10] sm:$0xff] %v500
        %517 = vst [vmem:[#allocation3 + $0x18] sm:$0xff] %v501
        %518 = vst [vmem:[#allocation3 + $0x20] sm:$0xff] %v502
        %519 = vst [vmem:[#allocation3 + $0x28] sm:$0xff] %v503
        %520 = vst [vmem:[#allocation3 + $0x30] sm:$0xff] %v504
        %521 = vst [vmem:[#allocation3 + $0x38] sm:$0xff] %v505
        %522 = vst [vmem:[#allocation3 + $0x40] sm:$0xff] %v506
        %523 = vst [vmem:[#allocation3 + $0x48] sm:$0xff] %v507
        %524 = vst [vmem:[#allocation3 + $0x50] sm:$0xff] %v508
        %525 = vst [vmem:[#allocation3 + $0x58] sm:$0xff] %v509
        %526 = vst [vmem:[#allocation3 + $0x60] sm:$0xff] %v510
        %527 = vst [vmem:[#allocation3 + $0x68] sm:$0xff] %v511
        %528 = vst [vmem:[#allocation3 + $0x70] sm:$0xff] %v512
        %529 = vst [vmem:[#allocation3 + $0x78] sm:$0xff] %v513
      $region60: #{_forward_impl.1} parent=47 // pred_fallthru
        _
      %p530 = scmp.gt.s32.totalorder %s23, 0
      // Predicated region
      $region61: #{_forward_impl.1} parent=47 // pred_check
        %p531 = pneg %p530
      $region62: #{_forward_impl.1} parent=47 // pred_check_branch
        %533 = sbr.rel (%p531) target = $region64
      $region63: #{_forward_impl.1} parent=47 // pred_region
        %v534 = vld [vmem:[#allocation2] sm:$0xff]
        %v535 = vld [vmem:[#allocation2 + $0x8] sm:$0xff]
        %v536 = vld [vmem:[#allocation2 + $0x10] sm:$0xff]
        %v537 = vld [vmem:[#allocation2 + $0x18] sm:$0xff]
        %v538 = vld [vmem:[#allocation2 + $0x20] sm:$0xff]
        %v539 = vld [vmem:[#allocation2 + $0x28] sm:$0xff]
        %v540 = vld [vmem:[#allocation2 + $0x30] sm:$0xff]
        %v541 = vld [vmem:[#allocation2 + $0x38] sm:$0xff]
        %s542 = smul.u32 %s23, 4
        %s543 = smul.addr %s542, 4
        %s544 = scalar_lea.vmem %s2, %s543
        %v545 = vld [vmem:[%s544] sm:$0xf]
        %v546 = vld [vmem:[%s544 + $0x4] sm:$0xf]
        %v547 = vld [vmem:[%s544 + $0x8] sm:$0xf]
        %v548 = vld [vmem:[%s544 + $0xc] sm:$0xf]
        %v553 = vunpack.c.l.b16 %v545
        %v554 = vunpack.c.l.b16 %v546
        %v555 = vunpack.c.l.b16 %v547
        %v556 = vunpack.c.l.b16 %v548
        %v557 = vpack.c.b16 %v554, %v553
        %v558 = vpack.c.b16 %v556, %v555
        %vm561 = vcmask 261120
        %v563 = vsel %vm561, %v534, 0
        %v566 = vsel %vm561, %v535, 0
        %v569 = vsel %vm561, %v536, 0
        %v572 = vsel %vm561, %v537, 0
        %v575 = vsel %vm561, %v538, 0
        %v578 = vsel %vm561, %v539, 0
        %v581 = vsel %vm561, %v540, 0
        %v584 = vsel %vm561, %v541, 0
        %586 = vmatprep.subr.bf16.mxu0 0
        %587 = vmatpush1.bf16.msra.mxu0 %v557
        %588 = vmatprep.subr.bf16.mxu0 0
        %589 = vmatpush1.bf16.msra.mxu0 %v558
        %590 = vmatprep.subr.bf16.mxu0 0
        %591 = vmatpush1.bf16.msra.mxu0 0
        %592 = vmatprep.subr.bf16.mxu0 0
        %593 = vmatpush1.bf16.msra.mxu0 0
        %594 = vmatprep.subr.bf16.mxu0 0
        %595 = vmatpush1.bf16.msra.mxu0 0
        %596 = vmatprep.subr.bf16.mxu0 0
        %597 = vmatpush1.bf16.msra.mxu0 0
        %598 = vmatprep.subr.bf16.mxu0 0
        %599 = vmatpush1.bf16.msra.mxu0 0
        %600 = vmatprep.subr.bf16.mxu0 0
        %601 = vmatpush1.bf16.msra.mxu0 0
        %602 = vmatprep.subr.bf16.mxu0 0
        %603 = vmatpush1.bf16.msra.mxu0 0
        %604 = vmatprep.subr.bf16.mxu0 0
        %605 = vmatpush1.bf16.msra.mxu0 0
        %606 = vmatprep.subr.bf16.mxu0 0
        %607 = vmatpush1.bf16.msra.mxu0 0
        %608 = vmatprep.subr.bf16.mxu0 0
        %609 = vmatpush1.bf16.msra.mxu0 0
        %610 = vmatprep.subr.bf16.mxu0 0
        %611 = vmatpush1.bf16.msra.mxu0 0
        %612 = vmatprep.subr.bf16.mxu0 0
        %613 = vmatpush1.bf16.msra.mxu0 0
        %614 = vmatprep.subr.bf16.mxu0 0
        %615 = vmatpush1.bf16.msra.mxu0 0
        %616 = vmatprep.subr.bf16.mxu0 0
        %617 = vmatpush1.bf16.msra.mxu0 0
        %618 = vmatprep.mubr.bf16.mxu0 0
        %619 = vmatmul.mubr.bf16.gmra.mrb[0].mxu0 %v563
        %v620 = vpop.f32.mrb[0].mxu0
        %v621 = vadd.f32 0.0, %v620
        %v622 = vpop.f32.mrb[0].mxu0
        %v623 = vpop.f32.mrb[0].mxu0
        %v624 = vadd.f32 0.0, %v623
        %v625 = vpop.f32.mrb[0].mxu0
        %626 = vmatprep.mubr.bf16.mxu0 0
        %627 = vmatmul.mubr.bf16.gmra.mrb[0].mxu0 %v566
        %v628 = vpop.f32.mrb[0].mxu0
        %v629 = vadd.f32 0.0, %v628
        %v630 = vpop.f32.mrb[0].mxu0
        %v631 = vpop.f32.mrb[0].mxu0
        %v632 = vadd.f32 0.0, %v631
        %v633 = vpop.f32.mrb[0].mxu0
        %634 = vmatprep.mubr.bf16.mxu0 0
        %635 = vmatmul.mubr.bf16.gmra.mrb[0].mxu0 %v569
        %v636 = vpop.f32.mrb[0].mxu0
        %v637 = vadd.f32 0.0, %v636
        %v638 = vpop.f32.mrb[0].mxu0
        %v639 = vpop.f32.mrb[0].mxu0
        %v640 = vadd.f32 0.0, %v639
        %v641 = vpop.f32.mrb[0].mxu0
        %642 = vmatprep.mubr.bf16.mxu0 0
        %643 = vmatmul.mubr.bf16.gmra.mrb[0].mxu0 %v572
        %v644 = vpop.f32.mrb[0].mxu0
        %v645 = vadd.f32 0.0, %v644
        %v646 = vpop.f32.mrb[0].mxu0
        %v647 = vpop.f32.mrb[0].mxu0
        %v648 = vadd.f32 0.0, %v647
        %v649 = vpop.f32.mrb[0].mxu0
        %650 = vmatprep.mubr.bf16.mxu0 0
        %651 = vmatmul.mubr.bf16.gmra.mrb[0].mxu0 %v575
        %v652 = vpop.f32.mrb[0].mxu0
        %v653 = vadd.f32 0.0, %v652
        %v654 = vpop.f32.mrb[0].mxu0
        %v655 = vpop.f32.mrb[0].mxu0
        %v656 = vadd.f32 0.0, %v655
        %v657 = vpop.f32.mrb[0].mxu0
        %658 = vmatprep.mubr.bf16.mxu0 0
        %659 = vmatmul.mubr.bf16.gmra.mrb[0].mxu0 %v578
        %v660 = vpop.f32.mrb[0].mxu0
        %v661 = vadd.f32 0.0, %v660
        %v662 = vpop.f32.mrb[0].mxu0
        %v663 = vpop.f32.mrb[0].mxu0
        %v664 = vadd.f32 0.0, %v663
        %v665 = vpop.f32.mrb[0].mxu0
        %666 = vmatprep.mubr.bf16.mxu0 0
        %667 = vmatmul.mubr.bf16.gmra.mrb[0].mxu0 %v581
        %v668 = vpop.f32.mrb[0].mxu0
        %v669 = vadd.f32 0.0, %v668
        %v670 = vpop.f32.mrb[0].mxu0
        %v671 = vpop.f32.mrb[0].mxu0
        %v672 = vadd.f32 0.0, %v671
        %v673 = vpop.f32.mrb[0].mxu0
        %674 = vmatprep.mubr.bf16.mxu0 0
        %675 = vmatmul.mubr.bf16.gmra.mrb[0].mxu0 %v584
        %v676 = vpop.f32.mrb[0].mxu0
        %v677 = vadd.f32 0.0, %v676
        %v678 = vpop.f32.mrb[0].mxu0
        %v679 = vpop.f32.mrb[0].mxu0
        %v680 = vadd.f32 0.0, %v679
        %v681 = vpop.f32.mrb[0].mxu0
        %682 = vdwg.mxu0
        %s683 = scalar_lea.vmem %s4, %s23
        %v684 = vld [vmem:[%s683] sm:$0x1]
        %v686 = vlaneseq
        %v687 = vshrl.u32 %v686, 7
        %v688 = vsub.s32 0, %v687
        %v689 = vrot.slane %v684, %v688
        %v691 = vadd.f32 %v621, %v689
        %v692 = vadd.f32 %v624, %v689
        %v693 = vadd.f32 %v629, %v689
        %v694 = vadd.f32 %v632, %v689
        %v695 = vadd.f32 %v637, %v689
        %v696 = vadd.f32 %v640, %v689
        %v697 = vadd.f32 %v645, %v689
        %v698 = vadd.f32 %v648, %v689
        %v699 = vadd.f32 %v653, %v689
        %v700 = vadd.f32 %v656, %v689
        %v701 = vadd.f32 %v661, %v689
        %v702 = vadd.f32 %v664, %v689
        %v703 = vadd.f32 %v669, %v689
        %v704 = vadd.f32 %v672, %v689
        %v705 = vadd.f32 %v677, %v689
        %v706 = vadd.f32 %v680, %v689
        %707 = vst [vmem:[#allocation3] sm:$0xff] %v691
        %708 = vst [vmem:[#allocation3 + $0x8] sm:$0xff] %v692
        %709 = vst [vmem:[#allocation3 + $0x10] sm:$0xff] %v693
        %710 = vst [vmem:[#allocation3 + $0x18] sm:$0xff] %v694
        %711 = vst [vmem:[#allocation3 + $0x20] sm:$0xff] %v695
        %712 = vst [vmem:[#allocation3 + $0x28] sm:$0xff] %v696
        %713 = vst [vmem:[#allocation3 + $0x30] sm:$0xff] %v697
        %714 = vst [vmem:[#allocation3 + $0x38] sm:$0xff] %v698
        %715 = vst [vmem:[#allocation3 + $0x40] sm:$0xff] %v699
        %716 = vst [vmem:[#allocation3 + $0x48] sm:$0xff] %v700
        %717 = vst [vmem:[#allocation3 + $0x50] sm:$0xff] %v701
        %718 = vst [vmem:[#allocation3 + $0x58] sm:$0xff] %v702
        %719 = vst [vmem:[#allocation3 + $0x60] sm:$0xff] %v703
        %720 = vst [vmem:[#allocation3 + $0x68] sm:$0xff] %v704
        %721 = vst [vmem:[#allocation3 + $0x70] sm:$0xff] %v705
        %722 = vst [vmem:[#allocation3 + $0x78] sm:$0xff] %v706
      $region64: #{_forward_impl.1} parent=47 // pred_fallthru
        _
      %s723 = smul.u32 %s23, 4
      %s724 = smul.addr %s723, 4
      %s725 = scalar_lea.vmem %s3, %s724
      %v726 = vld [vmem:[%s725] sm:$0xf]
      %v727 = vld [vmem:[%s725 + $0x4] sm:$0xf]
      %v728 = vld [vmem:[%s725 + $0x8] sm:$0xf]
      %v729 = vld [vmem:[%s725 + $0xc] sm:$0xf]
      %p730 = scmp.lt.s32.totalorder %s23, 1
      %s731 = smul.u32 %s23, 16
      %s732 = scalar_lea.vmem [#allocation4], %s731
      %v733 = vld [vmem:[%s732] sm:$0xff]
      %v734 = vld [vmem:[%s732 + $0x8] sm:$0xff]
      %s735 = scalar_lea.vmem [#allocation5], %s731
      %v736 = vld [vmem:[%s735] sm:$0xff]
      %v737 = vld [vmem:[%s735 + $0x8] sm:$0xff]
      %v738 = vld [vmem:[#allocation3] sm:$0xff]
      %v739 = vld [vmem:[#allocation3 + $0x8] sm:$0xff]
      %v740 = vpack.c.bf16 %v734, %v733
      %v745 = vunpack.c.l.b16 %v726
      %v746 = vunpack.c.l.b16 %v727
      %v747 = vunpack.c.l.b16 %v728
      %v748 = vunpack.c.l.b16 %v729
      %v749 = vpack.c.b16 %v746, %v745
      %v750 = vpack.c.b16 %v748, %v747
      %vm753 = vcmask 261120
      %v755 = vsel %vm753, %v740, 0
      %757 = vmatprep.subr.bf16.mxu0 0
      %758 = vmatpush1.bf16.msra.mxu0 %v749
      %759 = vmatprep.subr.bf16.mxu0 0
      %760 = vmatpush1.bf16.msra.mxu0 %v750
      %761 = vmatprep.subr.bf16.mxu0 0
      %762 = vmatpush1.bf16.msra.mxu0 0
      %763 = vmatprep.subr.bf16.mxu0 0
      %764 = vmatpush1.bf16.msra.mxu0 0
      %765 = vmatprep.subr.bf16.mxu0 0
      %766 = vmatpush1.bf16.msra.mxu0 0
      %767 = vmatprep.subr.bf16.mxu0 0
      %768 = vmatpush1.bf16.msra.mxu0 0
      %769 = vmatprep.subr.bf16.mxu0 0
      %770 = vmatpush1.bf16.msra.mxu0 0
      %771 = vmatprep.subr.bf16.mxu0 0
      %772 = vmatpush1.bf16.msra.mxu0 0
      %773 = vmatprep.subr.bf16.mxu0 0
      %774 = vmatpush1.bf16.msra.mxu0 0
      %775 = vmatprep.subr.bf16.mxu0 0
      %776 = vmatpush1.bf16.msra.mxu0 0
      %777 = vmatprep.subr.bf16.mxu0 0
      %778 = vmatpush1.bf16.msra.mxu0 0
      %779 = vmatprep.subr.bf16.mxu0 0
      %780 = vmatpush1.bf16.msra.mxu0 0
      %781 = vmatprep.subr.bf16.mxu0 0
      %782 = vmatpush1.bf16.msra.mxu0 0
      %783 = vmatprep.subr.bf16.mxu0 0
      %784 = vmatpush1.bf16.msra.mxu0 0
      %785 = vmatprep.subr.bf16.mxu0 0
      %786 = vmatpush1.bf16.msra.mxu0 0
      %787 = vmatprep.subr.bf16.mxu0 0
      %788 = vmatpush1.bf16.msra.mxu0 0
      %789 = vmatprep.mubr.bf16.mxu0 0
      %790 = vmatmul.mubr.bf16.gmra.mrb[0].mxu0 %v755
      %v791 = vpop.f32.mrb[0].mxu0
      %v792 = vadd.f32 0.0, %v791
      %v793 = vpop.f32.mrb[0].mxu0
      %v794 = vpop.f32.mrb[0].mxu0
      %v795 = vadd.f32 0.0, %v794
      %v796 = vpop.f32.mrb[0].mxu0
      %797 = vdwg.mxu0
      %v798 = vadd.f32 %v738, %v792
      %v799 = vadd.f32 %v739, %v795
      %v800 = vxor.u32 %v798, 2147483648
      %v801 = vxor.u32 %v799, 2147483648
      %v802 = vmul.f32 %v800, 1.442695
      %v803 = vpow.pop %v802
      %v804 = vmul.f32 %v801, 1.442695
      %v805 = vpow.pop %v804
      %v806 = vadd.f32 %v803, 1.0
      %v807 = vadd.f32 %v805, 1.0
      %v808 = vrcp.pop %v806
      %v809 = vmul.f32 1.0, %v808
      %v810 = vrcp.pop %v807
      %v811 = vmul.f32 1.0, %v810
      %v812 = vtanh.pop %v798
      %v813 = vtanh.pop %v799
      %816 = vrot.lane.b32.xlu0 %v736, 32
      %v817 = vpop.permute.xlu0 %816
      %818 = vrot.lane.b32.xlu0 %v737, 32
      %v819 = vpop.permute.xlu0 %818
      %v822 = vmul.f32 %v809, %v817
      %v823 = vmul.f32 %v811, %v819
      %826 = vrot.lane.b32.xlu0 %v812, 64
      %v827 = vpop.permute.xlu0 %826
      %828 = vrot.lane.b32.xlu0 %v813, 64
      %v829 = vpop.permute.xlu0 %828
      %v832 = vmul.f32 %v809, %v827
      %v833 = vmul.f32 %v811, %v829
      %836 = vrot.lane.b32.xlu0 %v832, 32
      %v837 = vpop.permute.xlu0 %836
      %838 = vrot.lane.b32.xlu0 %v833, 32
      %v839 = vpop.permute.xlu0 %838
      %v842 = vadd.f32 %v822, %v837
      %v843 = vadd.f32 %v823, %v839
      %v844 = vtanh.pop %v842
      %v845 = vtanh.pop %v843
      %848 = vrot.lane.b32.xlu0 %v844, 64
      %v849 = vpop.permute.xlu0 %848
      %850 = vrot.lane.b32.xlu0 %v845, 64
      %v851 = vpop.permute.xlu0 %850
      %v854 = vmul.f32 %v809, %v849
      %v855 = vmul.f32 %v811, %v851
      // Predicated region
      $region65: #{_forward_impl.1} parent=47 // pred_check
        %p856 = pneg %p730
      $region66: #{_forward_impl.1} parent=47 // pred_check_branch
        %858 = sbr.rel (%p856) target = $region68
      $region67: #{_forward_impl.1} parent=47 // pred_region
        %v859 = vpack.c.bf16 %v855, %v854
        %861 = vrot.lane.b32.xlu0 %v859, 32
        %v862 = vpop.permute.xlu0 %861
        %864 = vst.msk [vmem:[#allocation2] sm:$0xff] %vm753, %v862
      $region68: #{_forward_impl.1} parent=47 // pred_fallthru
        _
      %s865 = scalar_lea.vmem [#allocation3], 16
      %v866 = vld [vmem:[%s865] sm:$0xff]
      %v867 = vld [vmem:[%s865 + $0x8] sm:$0xff]
      %v868 = vpack.c.bf16 %v855, %v854
      %870 = vrot.lane.b32.xlu0 %v868, 32
      %v871 = vpop.permute.xlu0 %870
      %v873 = vsel %vm753, %v871, 0
      %875 = vmatprep.subr.bf16.mxu0 0
      %876 = vmatpush1.bf16.msra.mxu0 %v749
      %877 = vmatprep.subr.bf16.mxu0 0
      %878 = vmatpush1.bf16.msra.mxu0 %v750
      %879 = vmatprep.subr.bf16.mxu0 0
      %880 = vmatpush1.bf16.msra.mxu0 0
      %881 = vmatprep.subr.bf16.mxu0 0
      %882 = vmatpush1.bf16.msra.mxu0 0
      %883 = vmatprep.subr.bf16.mxu0 0
      %884 = vmatpush1.bf16.msra.mxu0 0
      %885 = vmatprep.subr.bf16.mxu0 0
      %886 = vmatpush1.bf16.msra.mxu0 0
      %887 = vmatprep.subr.bf16.mxu0 0
      %888 = vmatpush1.bf16.msra.mxu0 0
      %889 = vmatprep.subr.bf16.mxu0 0
      %890 = vmatpush1.bf16.msra.mxu0 0
      %891 = vmatprep.subr.bf16.mxu0 0
      %892 = vmatpush1.bf16.msra.mxu0 0
      %893 = vmatprep.subr.bf16.mxu0 0
      %894 = vmatpush1.bf16.msra.mxu0 0
      %895 = vmatprep.subr.bf16.mxu0 0
      %896 = vmatpush1.bf16.msra.mxu0 0
      %897 = vmatprep.subr.bf16.mxu0 0
      %898 = vmatpush1.bf16.msra.mxu0 0
      %899 = vmatprep.subr.bf16.mxu0 0
      %900 = vmatpush1.bf16.msra.mxu0 0
      %901 = vmatprep.subr.bf16.mxu0 0
      %902 = vmatpush1.bf16.msra.mxu0 0
      %903 = vmatprep.subr.bf16.mxu0 0
      %904 = vmatpush1.bf16.msra.mxu0 0
      %905 = vmatprep.subr.bf16.mxu0 0
      %906 = vmatpush1.bf16.msra.mxu0 0
      %907 = vmatprep.mubr.bf16.mxu0 0
      %908 = vmatmul.mubr.bf16.gmra.mrb[0].mxu0 %v873
      %v909 = vpop.f32.mrb[0].mxu0
      %v910 = vadd.f32 0.0, %v909
      %v911 = vpop.f32.mrb[0].mxu0
      %v912 = vpop.f32.mrb[0].mxu0
      %v913 = vadd.f32 0.0, %v912
      %v914 = vpop.f32.mrb[0].mxu0
      %915 = vdwg.mxu0
      %v916 = vadd.f32 %v866, %v910
      %v917 = vadd.f32 %v867, %v913
      %v918 = vxor.u32 %v916, 2147483648
      %v919 = vxor.u32 %v917, 2147483648
      %v920 = vmul.f32 %v918, 1.442695
      %v921 = vpow.pop %v920
      %v922 = vmul.f32 %v919, 1.442695
      %v923 = vpow.pop %v922
      %v924 = vadd.f32 %v921, 1.0
      %v925 = vadd.f32 %v923, 1.0
      %v926 = vrcp.pop %v924
      %v927 = vmul.f32 1.0, %v926
      %v928 = vrcp.pop %v925
      %v929 = vmul.f32 1.0, %v928
      %v930 = vtanh.pop %v916
      %v931 = vtanh.pop %v917
      %v932 = vmul.f32 %v927, %v842
      %v933 = vmul.f32 %v929, %v843
      %936 = vrot.lane.b32.xlu0 %v930, 64
      %v937 = vpop.permute.xlu0 %936
      %938 = vrot.lane.b32.xlu0 %v931, 64
      %v939 = vpop.permute.xlu0 %938
      %v942 = vmul.f32 %v927, %v937
      %v943 = vmul.f32 %v929, %v939
      %946 = vrot.lane.b32.xlu0 %v942, 32
      %v947 = vpop.permute.xlu0 %946
      %948 = vrot.lane.b32.xlu0 %v943, 32
      %v949 = vpop.permute.xlu0 %948
      %v952 = vadd.f32 %v932, %v947
      %v953 = vadd.f32 %v933, %v949
      %v954 = vtanh.pop %v952
      %v955 = vtanh.pop %v953
      %958 = vrot.lane.b32.xlu0 %v954, 64
      %v959 = vpop.permute.xlu0 %958
      %960 = vrot.lane.b32.xlu0 %v955, 64
      %v961 = vpop.permute.xlu0 %960
      %v964 = vmul.f32 %v927, %v959
      %v965 = vmul.f32 %v929, %v961
      // Predicated region
      $region69: #{_forward_impl.1} parent=47 // pred_check
        %p966 = pneg %p730
      $region70: #{_forward_impl.1} parent=47 // pred_check_branch
        %968 = sbr.rel (%p966) target = $region72
      $region71: #{_forward_impl.1} parent=47 // pred_region
        %v969 = vpack.c.bf16 %v965, %v964
        %971 = vrot.lane.b32.xlu0 %v969, 32
        %v972 = vpop.permute.xlu0 %971
        %s974 = scalar_lea.vmem [#allocation2], 8
        %975 = vst.msk [vmem:[%s974] sm:$0xff] %vm753, %v972
      $region72: #{_forward_impl.1} parent=47 // pred_fallthru
        _
      %s976 = scalar_lea.vmem [#allocation3], 32
      %v977 = vld [vmem:[%s976] sm:$0xff]
      %v978 = vld [vmem:[%s976 + $0x8] sm:$0xff]
      %v979 = vpack.c.bf16 %v965, %v964
      %981 = vrot.lane.b32.xlu0 %v979, 32
      %v982 = vpop.permute.xlu0 %981
      %v984 = vsel %vm753, %v982, 0
      %986 = vmatprep.subr.bf16.mxu0 0
      %987 = vmatpush1.bf16.msra.mxu0 %v749
      %988 = vmatprep.subr.bf16.mxu0 0
      %989 = vmatpush1.bf16.msra.mxu0 %v750
      %990 = vmatprep.subr.bf16.mxu0 0
      %991 = vmatpush1.bf16.msra.mxu0 0
      %992 = vmatprep.subr.bf16.mxu0 0
      %993 = vmatpush1.bf16.msra.mxu0 0
      %994 = vmatprep.subr.bf16.mxu0 0
      %995 = vmatpush1.bf16.msra.mxu0 0
      %996 = vmatprep.subr.bf16.mxu0 0
      %997 = vmatpush1.bf16.msra.mxu0 0
      %998 = vmatprep.subr.bf16.mxu0 0
      %999 = vmatpush1.bf16.msra.mxu0 0
      %1000 = vmatprep.subr.bf16.mxu0 0
      %1001 = vmatpush1.bf16.msra.mxu0 0
      %1002 = vmatprep.subr.bf16.mxu0 0
      %1003 = vmatpush1.bf16.msra.mxu0 0
      %1004 = vmatprep.subr.bf16.mxu0 0
      %1005 = vmatpush1.bf16.msra.mxu0 0
      %1006 = vmatprep.subr.bf16.mxu0 0
      %1007 = vmatpush1.bf16.msra.mxu0 0
      %1008 = vmatprep.subr.bf16.mxu0 0
      %1009 = vmatpush1.bf16.msra.mxu0 0
      %1010 = vmatprep.subr.bf16.mxu0 0
      %1011 = vmatpush1.bf16.msra.mxu0 0
      %1012 = vmatprep.subr.bf16.mxu0 0
      %1013 = vmatpush1.bf16.msra.mxu0 0
      %1014 = vmatprep.subr.bf16.mxu0 0
      %1015 = vmatpush1.bf16.msra.mxu0 0
      %1016 = vmatprep.subr.bf16.mxu0 0
      %1017 = vmatpush1.bf16.msra.mxu0 0
      %1018 = vmatprep.mubr.bf16.mxu0 0
      %1019 = vmatmul.mubr.bf16.gmra.mrb[0].mxu0 %v984
      %v1020 = vpop.f32.mrb[0].mxu0
      %v1021 = vadd.f32 0.0, %v1020
      %v1022 = vpop.f32.mrb[0].mxu0
      %v1023 = vpop.f32.mrb[0].mxu0
      %v1024 = vadd.f32 0.0, %v1023
      %v1025 = vpop.f32.mrb[0].mxu0
      %1026 = vdwg.mxu0
      %v1027 = vadd.f32 %v977, %v1021
      %v1028 = vadd.f32 %v978, %v1024
      %v1029 = vxor.u32 %v1027, 2147483648
      %v1030 = vxor.u32 %v1028, 2147483648
      %v1031 = vmul.f32 %v1029, 1.442695
      %v1032 = vpow.pop %v1031
      %v1033 = vmul.f32 %v1030, 1.442695
      %v1034 = vpow.pop %v1033
      %v1035 = vadd.f32 %v1032, 1.0
      %v1036 = vadd.f32 %v1034, 1.0
      %v1037 = vrcp.pop %v1035
      %v1038 = vmul.f32 1.0, %v1037
      %v1039 = vrcp.pop %v1036
      %v1040 = vmul.f32 1.0, %v1039
      %v1041 = vtanh.pop %v1027
      %v1042 = vtanh.pop %v1028
      %v1043 = vmul.f32 %v1038, %v952
      %v1044 = vmul.f32 %v1040, %v953
      %1047 = vrot.lane.b32.xlu0 %v1041, 64
      %v1048 = vpop.permute.xlu0 %1047
      %1049 = vrot.lane.b32.xlu0 %v1042, 64
      %v1050 = vpop.permute.xlu0 %1049
      %v1053 = vmul.f32 %v1038, %v1048
      %v1054 = vmul.f32 %v1040, %v1050
      %1057 = vrot.lane.b32.xlu0 %v1053, 32
      %v1058 = vpop.permute.xlu0 %1057
      %1059 = vrot.lane.b32.xlu0 %v1054, 32
      %v1060 = vpop.permute.xlu0 %1059
      %v1063 = vadd.f32 %v1043, %v1058
      %v1064 = vadd.f32 %v1044, %v1060
      %v1065 = vtanh.pop %v1063
      %v1066 = vtanh.pop %v1064
      %1069 = vrot.lane.b32.xlu0 %v1065, 64
      %v1070 = vpop.permute.xlu0 %1069
      %1071 = vrot.lane.b32.xlu0 %v1066, 64
      %v1072 = vpop.permute.xlu0 %1071
      %v1075 = vmul.f32 %v1038, %v1070
      %v1076 = vmul.f32 %v1040, %v1072
      // Predicated region
      $region73: #{_forward_impl.1} parent=47 // pred_check
        %p1077 = pneg %p730
      $region74: #{_forward_impl.1} parent=47 // pred_check_branch
        %1079 = sbr.rel (%p1077) target = $region76
      $region75: #{_forward_impl.1} parent=47 // pred_region
        %v1080 = vpack.c.bf16 %v1076, %v1075
        %1082 = vrot.lane.b32.xlu0 %v1080, 32
        %v1083 = vpop.permute.xlu0 %1082
        %s1085 = scalar_lea.vmem [#allocation2], 16
        %1086 = vst.msk [vmem:[%s1085] sm:$0xff] %vm753, %v1083
      $region76: #{_forward_impl.1} parent=47 // pred_fallthru
        _
      %s1087 = scalar_lea.vmem [#allocation3], 48
      %v1088 = vld [vmem:[%s1087] sm:$0xff]
      %v1089 = vld [vmem:[%s1087 + $0x8] sm:$0xff]
      %v1090 = vpack.c.bf16 %v1076, %v1075
      %1092 = vrot.lane.b32.xlu0 %v1090, 32
      %v1093 = vpop.permute.xlu0 %1092
      %v1095 = vsel %vm753, %v1093, 0
      %1097 = vmatprep.subr.bf16.mxu0 0
      %1098 = vmatpush1.bf16.msra.mxu0 %v749
      %1099 = vmatprep.subr.bf16.mxu0 0
      %1100 = vmatpush1.bf16.msra.mxu0 %v750
      %1101 = vmatprep.subr.bf16.mxu0 0
      %1102 = vmatpush1.bf16.msra.mxu0 0
      %1103 = vmatprep.subr.bf16.mxu0 0
      %1104 = vmatpush1.bf16.msra.mxu0 0
      %1105 = vmatprep.subr.bf16.mxu0 0
      %1106 = vmatpush1.bf16.msra.mxu0 0
      %1107 = vmatprep.subr.bf16.mxu0 0
      %1108 = vmatpush1.bf16.msra.mxu0 0
      %1109 = vmatprep.subr.bf16.mxu0 0
      %1110 = vmatpush1.bf16.msra.mxu0 0
      %1111 = vmatprep.subr.bf16.mxu0 0
      %1112 = vmatpush1.bf16.msra.mxu0 0
      %1113 = vmatprep.subr.bf16.mxu0 0
      %1114 = vmatpush1.bf16.msra.mxu0 0
      %1115 = vmatprep.subr.bf16.mxu0 0
      %1116 = vmatpush1.bf16.msra.mxu0 0
      %1117 = vmatprep.subr.bf16.mxu0 0
      %1118 = vmatpush1.bf16.msra.mxu0 0
      %1119 = vmatprep.subr.bf16.mxu0 0
      %1120 = vmatpush1.bf16.msra.mxu0 0
      %1121 = vmatprep.subr.bf16.mxu0 0
      %1122 = vmatpush1.bf16.msra.mxu0 0
      %1123 = vmatprep.subr.bf16.mxu0 0
      %1124 = vmatpush1.bf16.msra.mxu0 0
      %1125 = vmatprep.subr.bf16.mxu0 0
      %1126 = vmatpush1.bf16.msra.mxu0 0
      %1127 = vmatprep.subr.bf16.mxu0 0
      %1128 = vmatpush1.bf16.msra.mxu0 0
      %1129 = vmatprep.mubr.bf16.mxu0 0
      %1130 = vmatmul.mubr.bf16.gmra.mrb[0].mxu0 %v1095
      %v1131 = vpop.f32.mrb[0].mxu0
      %v1132 = vadd.f32 0.0, %v1131
      %v1133 = vpop.f32.mrb[0].mxu0
      %v1134 = vpop.f32.mrb[0].mxu0
      %v1135 = vadd.f32 0.0, %v1134
      %v1136 = vpop.f32.mrb[0].mxu0
      %1137 = vdwg.mxu0
      %v1138 = vadd.f32 %v1088, %v1132
      %v1139 = vadd.f32 %v1089, %v1135
      %v1140 = vxor.u32 %v1138, 2147483648
      %v1141 = vxor.u32 %v1139, 2147483648
      %v1142 = vmul.f32 %v1140, 1.442695
      %v1143 = vpow.pop %v1142
      %v1144 = vmul.f32 %v1141, 1.442695
      %v1145 = vpow.pop %v1144
      %v1146 = vadd.f32 %v1143, 1.0
      %v1147 = vadd.f32 %v1145, 1.0
      %v1148 = vrcp.pop %v1146
      %v1149 = vmul.f32 1.0, %v1148
      %v1150 = vrcp.pop %v1147
      %v1151 = vmul.f32 1.0, %v1150
      %v1152 = vtanh.pop %v1138
      %v1153 = vtanh.pop %v1139
      %v1154 = vmul.f32 %v1149, %v1063
      %v1155 = vmul.f32 %v1151, %v1064
      %1158 = vrot.lane.b32.xlu0 %v1152, 64
      %v1159 = vpop.permute.xlu0 %1158
      %1160 = vrot.lane.b32.xlu0 %v1153, 64
      %v1161 = vpop.permute.xlu0 %1160
      %v1164 = vmul.f32 %v1149, %v1159
      %v1165 = vmul.f32 %v1151, %v1161
      %1168 = vrot.lane.b32.xlu0 %v1164, 32
      %v1169 = vpop.permute.xlu0 %1168
      %1170 = vrot.lane.b32.xlu0 %v1165, 32
      %v1171 = vpop.permute.xlu0 %1170
      %v1174 = vadd.f32 %v1154, %v1169
      %v1175 = vadd.f32 %v1155, %v1171
      %v1176 = vtanh.pop %v1174
      %v1177 = vtanh.pop %v1175
      %1180 = vrot.lane.b32.xlu0 %v1176, 64
      %v1181 = vpop.permute.xlu0 %1180
      %1182 = vrot.lane.b32.xlu0 %v1177, 64
      %v1183 = vpop.permute.xlu0 %1182
      %v1186 = vmul.f32 %v1149, %v1181
      %v1187 = vmul.f32 %v1151, %v1183
      // Predicated region
      $region77: #{_forward_impl.1} parent=47 // pred_check
        %p1188 = pneg %p730
      $region78: #{_forward_impl.1} parent=47 // pred_check_branch
        %1190 = sbr.rel (%p1188) target = $region80
      $region79: #{_forward_impl.1} parent=47 // pred_region
        %v1191 = vpack.c.bf16 %v1187, %v1186
        %1193 = vrot.lane.b32.xlu0 %v1191, 32
        %v1194 = vpop.permute.xlu0 %1193
        %s1196 = scalar_lea.vmem [#allocation2], 24
        %1197 = vst.msk [vmem:[%s1196] sm:$0xff] %vm753, %v1194
      $region80: #{_forward_impl.1} parent=47 // pred_fallthru
        _
      %s1198 = scalar_lea.vmem [#allocation3], 64
      %v1199 = vld [vmem:[%s1198] sm:$0xff]
      %v1200 = vld [vmem:[%s1198 + $0x8] sm:$0xff]
      %v1201 = vpack.c.bf16 %v1187, %v1186
      %1203 = vrot.lane.b32.xlu0 %v1201, 32
      %v1204 = vpop.permute.xlu0 %1203
      %v1206 = vsel %vm753, %v1204, 0
      %1208 = vmatprep.subr.bf16.mxu0 0
      %1209 = vmatpush1.bf16.msra.mxu0 %v749
      %1210 = vmatprep.subr.bf16.mxu0 0
      %1211 = vmatpush1.bf16.msra.mxu0 %v750
      %1212 = vmatprep.subr.bf16.mxu0 0
      %1213 = vmatpush1.bf16.msra.mxu0 0
      %1214 = vmatprep.subr.bf16.mxu0 0
      %1215 = vmatpush1.bf16.msra.mxu0 0
      %1216 = vmatprep.subr.bf16.mxu0 0
      %1217 = vmatpush1.bf16.msra.mxu0 0
      %1218 = vmatprep.subr.bf16.mxu0 0
      %1219 = vmatpush1.bf16.msra.mxu0 0
      %1220 = vmatprep.subr.bf16.mxu0 0
      %1221 = vmatpush1.bf16.msra.mxu0 0
      %1222 = vmatprep.subr.bf16.mxu0 0
      %1223 = vmatpush1.bf16.msra.mxu0 0
      %1224 = vmatprep.subr.bf16.mxu0 0
      %1225 = vmatpush1.bf16.msra.mxu0 0
      %1226 = vmatprep.subr.bf16.mxu0 0
      %1227 = vmatpush1.bf16.msra.mxu0 0
      %1228 = vmatprep.subr.bf16.mxu0 0
      %1229 = vmatpush1.bf16.msra.mxu0 0
      %1230 = vmatprep.subr.bf16.mxu0 0
      %1231 = vmatpush1.bf16.msra.mxu0 0
      %1232 = vmatprep.subr.bf16.mxu0 0
      %1233 = vmatpush1.bf16.msra.mxu0 0
      %1234 = vmatprep.subr.bf16.mxu0 0
      %1235 = vmatpush1.bf16.msra.mxu0 0
      %1236 = vmatprep.subr.bf16.mxu0 0
      %1237 = vmatpush1.bf16.msra.mxu0 0
      %1238 = vmatprep.subr.bf16.mxu0 0
      %1239 = vmatpush1.bf16.msra.mxu0 0
      %1240 = vmatprep.mubr.bf16.mxu0 0
      %1241 = vmatmul.mubr.bf16.gmra.mrb[0].mxu0 %v1206
      %v1242 = vpop.f32.mrb[0].mxu0
      %v1243 = vadd.f32 0.0, %v1242
      %v1244 = vpop.f32.mrb[0].mxu0
      %v1245 = vpop.f32.mrb[0].mxu0
      %v1246 = vadd.f32 0.0, %v1245
      %v1247 = vpop.f32.mrb[0].mxu0
      %1248 = vdwg.mxu0
      %v1249 = vadd.f32 %v1199, %v1243
      %v1250 = vadd.f32 %v1200, %v1246
      %v1251 = vxor.u32 %v1249, 2147483648
      %v1252 = vxor.u32 %v1250, 2147483648
      %v1253 = vmul.f32 %v1251, 1.442695
      %v1254 = vpow.pop %v1253
      %v1255 = vmul.f32 %v1252, 1.442695
      %v1256 = vpow.pop %v1255
      %v1257 = vadd.f32 %v1254, 1.0
      %v1258 = vadd.f32 %v1256, 1.0
      %v1259 = vrcp.pop %v1257
      %v1260 = vmul.f32 1.0, %v1259
      %v1261 = vrcp.pop %v1258
      %v1262 = vmul.f32 1.0, %v1261
      %v1263 = vtanh.pop %v1249
      %v1264 = vtanh.pop %v1250
      %v1265 = vmul.f32 %v1260, %v1174
      %v1266 = vmul.f32 %v1262, %v1175
      %1269 = vrot.lane.b32.xlu0 %v1263, 64
      %v1270 = vpop.permute.xlu0 %1269
      %1271 = vrot.lane.b32.xlu0 %v1264, 64
      %v1272 = vpop.permute.xlu0 %1271
      %v1275 = vmul.f32 %v1260, %v1270
      %v1276 = vmul.f32 %v1262, %v1272
      %1279 = vrot.lane.b32.xlu0 %v1275, 32
      %v1280 = vpop.permute.xlu0 %1279
      %1281 = vrot.lane.b32.xlu0 %v1276, 32
      %v1282 = vpop.permute.xlu0 %1281
      %v1285 = vadd.f32 %v1265, %v1280
      %v1286 = vadd.f32 %v1266, %v1282
      %v1287 = vtanh.pop %v1285
      %v1288 = vtanh.pop %v1286
      %1291 = vrot.lane.b32.xlu0 %v1287, 64
      %v1292 = vpop.permute.xlu0 %1291
      %1293 = vrot.lane.b32.xlu0 %v1288, 64
      %v1294 = vpop.permute.xlu0 %1293
      %v1297 = vmul.f32 %v1260, %v1292
      %v1298 = vmul.f32 %v1262, %v1294
      // Predicated region
      $region81: #{_forward_impl.1} parent=47 // pred_check
        %p1299 = pneg %p730
      $region82: #{_forward_impl.1} parent=47 // pred_check_branch
        %1301 = sbr.rel (%p1299) target = $region84
      $region83: #{_forward_impl.1} parent=47 // pred_region
        %v1302 = vpack.c.bf16 %v1298, %v1297
        %1304 = vrot.lane.b32.xlu0 %v1302, 32
        %v1305 = vpop.permute.xlu0 %1304
        %s1307 = scalar_lea.vmem [#allocation2], 32
        %1308 = vst.msk [vmem:[%s1307] sm:$0xff] %vm753, %v1305
      $region84: #{_forward_impl.1} parent=47 // pred_fallthru
        _
      %s1309 = scalar_lea.vmem [#allocation3], 80
      %v1310 = vld [vmem:[%s1309] sm:$0xff]
      %v1311 = vld [vmem:[%s1309 + $0x8] sm:$0xff]
      %v1312 = vpack.c.bf16 %v1298, %v1297
      %1314 = vrot.lane.b32.xlu0 %v1312, 32
      %v1315 = vpop.permute.xlu0 %1314
      %v1317 = vsel %vm753, %v1315, 0
      %1319 = vmatprep.subr.bf16.mxu0 0
      %1320 = vmatpush1.bf16.msra.mxu0 %v749
      %1321 = vmatprep.subr.bf16.mxu0 0
      %1322 = vmatpush1.bf16.msra.mxu0 %v750
      %1323 = vmatprep.subr.bf16.mxu0 0
      %1324 = vmatpush1.bf16.msra.mxu0 0
      %1325 = vmatprep.subr.bf16.mxu0 0
      %1326 = vmatpush1.bf16.msra.mxu0 0
      %1327 = vmatprep.subr.bf16.mxu0 0
      %1328 = vmatpush1.bf16.msra.mxu0 0
      %1329 = vmatprep.subr.bf16.mxu0 0
      %1330 = vmatpush1.bf16.msra.mxu0 0
      %1331 = vmatprep.subr.bf16.mxu0 0
      %1332 = vmatpush1.bf16.msra.mxu0 0
      %1333 = vmatprep.subr.bf16.mxu0 0
      %1334 = vmatpush1.bf16.msra.mxu0 0
      %1335 = vmatprep.subr.bf16.mxu0 0
      %1336 = vmatpush1.bf16.msra.mxu0 0
      %1337 = vmatprep.subr.bf16.mxu0 0
      %1338 = vmatpush1.bf16.msra.mxu0 0
      %1339 = vmatprep.subr.bf16.mxu0 0
      %1340 = vmatpush1.bf16.msra.mxu0 0
      %1341 = vmatprep.subr.bf16.mxu0 0
      %1342 = vmatpush1.bf16.msra.mxu0 0
      %1343 = vmatprep.subr.bf16.mxu0 0
      %1344 = vmatpush1.bf16.msra.mxu0 0
      %1345 = vmatprep.subr.bf16.mxu0 0
      %1346 = vmatpush1.bf16.msra.mxu0 0
      %1347 = vmatprep.subr.bf16.mxu0 0
      %1348 = vmatpush1.bf16.msra.mxu0 0
      %1349 = vmatprep.subr.bf16.mxu0 0
      %1350 = vmatpush1.bf16.msra.mxu0 0
      %1351 = vmatprep.mubr.bf16.mxu0 0
      %1352 = vmatmul.mubr.bf16.gmra.mrb[0].mxu0 %v1317
      %v1353 = vpop.f32.mrb[0].mxu0
      %v1354 = vadd.f32 0.0, %v1353
      %v1355 = vpop.f32.mrb[0].mxu0
      %v1356 = vpop.f32.mrb[0].mxu0
      %v1357 = vadd.f32 0.0, %v1356
      %v1358 = vpop.f32.mrb[0].mxu0
      %1359 = vdwg.mxu0
      %v1360 = vadd.f32 %v1310, %v1354
      %v1361 = vadd.f32 %v1311, %v1357
      %v1362 = vxor.u32 %v1360, 2147483648
      %v1363 = vxor.u32 %v1361, 2147483648
      %v1364 = vmul.f32 %v1362, 1.442695
      %v1365 = vpow.pop %v1364
      %v1366 = vmul.f32 %v1363, 1.442695
      %v1367 = vpow.pop %v1366
      %v1368 = vadd.f32 %v1365, 1.0
      %v1369 = vadd.f32 %v1367, 1.0
      %v1370 = vrcp.pop %v1368
      %v1371 = vmul.f32 1.0, %v1370
      %v1372 = vrcp.pop %v1369
      %v1373 = vmul.f32 1.0, %v1372
      %v1374 = vtanh.pop %v1360
      %v1375 = vtanh.pop %v1361
      %v1376 = vmul.f32 %v1371, %v1285
      %v1377 = vmul.f32 %v1373, %v1286
      %1380 = vrot.lane.b32.xlu0 %v1374, 64
      %v1381 = vpop.permute.xlu0 %1380
      %1382 = vrot.lane.b32.xlu0 %v1375, 64
      %v1383 = vpop.permute.xlu0 %1382
      %v1386 = vmul.f32 %v1371, %v1381
      %v1387 = vmul.f32 %v1373, %v1383
      %1390 = vrot.lane.b32.xlu0 %v1386, 32
      %v1391 = vpop.permute.xlu0 %1390
      %1392 = vrot.lane.b32.xlu0 %v1387, 32
      %v1393 = vpop.permute.xlu0 %1392
      %v1396 = vadd.f32 %v1376, %v1391
      %v1397 = vadd.f32 %v1377, %v1393
      %v1398 = vtanh.pop %v1396
      %v1399 = vtanh.pop %v1397
      %1402 = vrot.lane.b32.xlu0 %v1398, 64
      %v1403 = vpop.permute.xlu0 %1402
      %1404 = vrot.lane.b32.xlu0 %v1399, 64
      %v1405 = vpop.permute.xlu0 %1404
      %v1408 = vmul.f32 %v1371, %v1403
      %v1409 = vmul.f32 %v1373, %v1405
      // Predicated region
      $region85: #{_forward_impl.1} parent=47 // pred_check
        %p1410 = pneg %p730
      $region86: #{_forward_impl.1} parent=47 // pred_check_branch
        %1412 = sbr.rel (%p1410) target = $region88
      $region87: #{_forward_impl.1} parent=47 // pred_region
        %v1413 = vpack.c.bf16 %v1409, %v1408
        %1415 = vrot.lane.b32.xlu0 %v1413, 32
        %v1416 = vpop.permute.xlu0 %1415
        %s1418 = scalar_lea.vmem [#allocation2], 40
        %1419 = vst.msk [vmem:[%s1418] sm:$0xff] %vm753, %v1416
      $region88: #{_forward_impl.1} parent=47 // pred_fallthru
        _
      %s1420 = scalar_lea.vmem [#allocation3], 96
      %v1421 = vld [vmem:[%s1420] sm:$0xff]
      %v1422 = vld [vmem:[%s1420 + $0x8] sm:$0xff]
      %v1423 = vpack.c.bf16 %v1409, %v1408
      %1425 = vrot.lane.b32.xlu0 %v1423, 32
      %v1426 = vpop.permute.xlu0 %1425
      %v1428 = vsel %vm753, %v1426, 0
      %1430 = vmatprep.subr.bf16.mxu0 0
      %1431 = vmatpush1.bf16.msra.mxu0 %v749
      %1432 = vmatprep.subr.bf16.mxu0 0
      %1433 = vmatpush1.bf16.msra.mxu0 %v750
      %1434 = vmatprep.subr.bf16.mxu0 0
      %1435 = vmatpush1.bf16.msra.mxu0 0
      %1436 = vmatprep.subr.bf16.mxu0 0
      %1437 = vmatpush1.bf16.msra.mxu0 0
      %1438 = vmatprep.subr.bf16.mxu0 0
      %1439 = vmatpush1.bf16.msra.mxu0 0
      %1440 = vmatprep.subr.bf16.mxu0 0
      %1441 = vmatpush1.bf16.msra.mxu0 0
      %1442 = vmatprep.subr.bf16.mxu0 0
      %1443 = vmatpush1.bf16.msra.mxu0 0
      %1444 = vmatprep.subr.bf16.mxu0 0
      %1445 = vmatpush1.bf16.msra.mxu0 0
      %1446 = vmatprep.subr.bf16.mxu0 0
      %1447 = vmatpush1.bf16.msra.mxu0 0
      %1448 = vmatprep.subr.bf16.mxu0 0
      %1449 = vmatpush1.bf16.msra.mxu0 0
      %1450 = vmatprep.subr.bf16.mxu0 0
      %1451 = vmatpush1.bf16.msra.mxu0 0
      %1452 = vmatprep.subr.bf16.mxu0 0
      %1453 = vmatpush1.bf16.msra.mxu0 0
      %1454 = vmatprep.subr.bf16.mxu0 0
      %1455 = vmatpush1.bf16.msra.mxu0 0
      %1456 = vmatprep.subr.bf16.mxu0 0
      %1457 = vmatpush1.bf16.msra.mxu0 0
      %1458 = vmatprep.subr.bf16.mxu0 0
      %1459 = vmatpush1.bf16.msra.mxu0 0
      %1460 = vmatprep.subr.bf16.mxu0 0
      %1461 = vmatpush1.bf16.msra.mxu0 0
      %1462 = vmatprep.mubr.bf16.mxu0 0
      %1463 = vmatmul.mubr.bf16.gmra.mrb[0].mxu0 %v1428
      %v1464 = vpop.f32.mrb[0].mxu0
      %v1465 = vadd.f32 0.0, %v1464
      %v1466 = vpop.f32.mrb[0].mxu0
      %v1467 = vpop.f32.mrb[0].mxu0
      %v1468 = vadd.f32 0.0, %v1467
      %v1469 = vpop.f32.mrb[0].mxu0
      %1470 = vdwg.mxu0
      %v1471 = vadd.f32 %v1421, %v1465
      %v1472 = vadd.f32 %v1422, %v1468
      %v1473 = vxor.u32 %v1471, 2147483648
      %v1474 = vxor.u32 %v1472, 2147483648
      %v1475 = vmul.f32 %v1473, 1.442695
      %v1476 = vpow.pop %v1475
      %v1477 = vmul.f32 %v1474, 1.442695
      %v1478 = vpow.pop %v1477
      %v1479 = vadd.f32 %v1476, 1.0
      %v1480 = vadd.f32 %v1478, 1.0
      %v1481 = vrcp.pop %v1479
      %v1482 = vmul.f32 1.0, %v1481
      %v1483 = vrcp.pop %v1480
      %v1484 = vmul.f32 1.0, %v1483
      %v1485 = vtanh.pop %v1471
      %v1486 = vtanh.pop %v1472
      %v1487 = vmul.f32 %v1482, %v1396
      %v1488 = vmul.f32 %v1484, %v1397
      %1491 = vrot.lane.b32.xlu0 %v1485, 64
      %v1492 = vpop.permute.xlu0 %1491
      %1493 = vrot.lane.b32.xlu0 %v1486, 64
      %v1494 = vpop.permute.xlu0 %1493
      %v1497 = vmul.f32 %v1482, %v1492
      %v1498 = vmul.f32 %v1484, %v1494
      %1501 = vrot.lane.b32.xlu0 %v1497, 32
      %v1502 = vpop.permute.xlu0 %1501
      %1503 = vrot.lane.b32.xlu0 %v1498, 32
      %v1504 = vpop.permute.xlu0 %1503
      %v1507 = vadd.f32 %v1487, %v1502
      %v1508 = vadd.f32 %v1488, %v1504
      %v1509 = vtanh.pop %v1507
      %v1510 = vtanh.pop %v1508
      %1513 = vrot.lane.b32.xlu0 %v1509, 64
      %v1514 = vpop.permute.xlu0 %1513
      %1515 = vrot.lane.b32.xlu0 %v1510, 64
      %v1516 = vpop.permute.xlu0 %1515
      %v1519 = vmul.f32 %v1482, %v1514
      %v1520 = vmul.f32 %v1484, %v1516
      // Predicated region
      $region89: #{_forward_impl.1} parent=47 // pred_check
        %p1521 = pneg %p730
      $region90: #{_forward_impl.1} parent=47 // pred_check_branch
        %1523 = sbr.rel (%p1521) target = $region92
      $region91: #{_forward_impl.1} parent=47 // pred_region
        %v1524 = vpack.c.bf16 %v1520, %v1519
        %1526 = vrot.lane.b32.xlu0 %v1524, 32
        %v1527 = vpop.permute.xlu0 %1526
        %s1529 = scalar_lea.vmem [#allocation2], 48
        %1530 = vst.msk [vmem:[%s1529] sm:$0xff] %vm753, %v1527
      $region92: #{_forward_impl.1} parent=47 // pred_fallthru
        _
      %s1531 = scalar_lea.vmem [#allocation3], 112
      %v1532 = vld [vmem:[%s1531] sm:$0xff]
      %v1533 = vld [vmem:[%s1531 + $0x8] sm:$0xff]
      %v1534 = vpack.c.bf16 %v1520, %v1519
      %1536 = vrot.lane.b32.xlu0 %v1534, 32
      %v1537 = vpop.permute.xlu0 %1536
      %v1539 = vsel %vm753, %v1537, 0
      %1541 = vmatprep.subr.bf16.mxu0 0
      %1542 = vmatpush1.bf16.msra.mxu0 %v749
      %1543 = vmatprep.subr.bf16.mxu0 0
      %1544 = vmatpush1.bf16.msra.mxu0 %v750
      %1545 = vmatprep.subr.bf16.mxu0 0
      %1546 = vmatpush1.bf16.msra.mxu0 0
      %1547 = vmatprep.subr.bf16.mxu0 0
      %1548 = vmatpush1.bf16.msra.mxu0 0
      %1549 = vmatprep.subr.bf16.mxu0 0
      %1550 = vmatpush1.bf16.msra.mxu0 0
      %1551 = vmatprep.subr.bf16.mxu0 0
      %1552 = vmatpush1.bf16.msra.mxu0 0
      %1553 = vmatprep.subr.bf16.mxu0 0
      %1554 = vmatpush1.bf16.msra.mxu0 0
      %1555 = vmatprep.subr.bf16.mxu0 0
      %1556 = vmatpush1.bf16.msra.mxu0 0
      %1557 = vmatprep.subr.bf16.mxu0 0
      %1558 = vmatpush1.bf16.msra.mxu0 0
      %1559 = vmatprep.subr.bf16.mxu0 0
      %1560 = vmatpush1.bf16.msra.mxu0 0
      %1561 = vmatprep.subr.bf16.mxu0 0
      %1562 = vmatpush1.bf16.msra.mxu0 0
      %1563 = vmatprep.subr.bf16.mxu0 0
      %1564 = vmatpush1.bf16.msra.mxu0 0
      %1565 = vmatprep.subr.bf16.mxu0 0
      %1566 = vmatpush1.bf16.msra.mxu0 0
      %1567 = vmatprep.subr.bf16.mxu0 0
      %1568 = vmatpush1.bf16.msra.mxu0 0
      %1569 = vmatprep.subr.bf16.mxu0 0
      %1570 = vmatpush1.bf16.msra.mxu0 0
      %1571 = vmatprep.subr.bf16.mxu0 0
      %1572 = vmatpush1.bf16.msra.mxu0 0
      %1573 = vmatprep.mubr.bf16.mxu0 0
      %1574 = vmatmul.mubr.bf16.gmra.mrb[0].mxu0 %v1539
      %v1575 = vpop.f32.mrb[0].mxu0
      %v1576 = vadd.f32 0.0, %v1575
      %v1577 = vpop.f32.mrb[0].mxu0
      %v1578 = vpop.f32.mrb[0].mxu0
      %v1579 = vadd.f32 0.0, %v1578
      %v1580 = vpop.f32.mrb[0].mxu0
      %1581 = vdwg.mxu0
      %v1582 = vadd.f32 %v1532, %v1576
      %v1583 = vadd.f32 %v1533, %v1579
      %v1584 = vxor.u32 %v1582, 2147483648
      %v1585 = vxor.u32 %v1583, 2147483648
      %v1586 = vmul.f32 %v1584, 1.442695
      %v1587 = vpow.pop %v1586
      %v1588 = vmul.f32 %v1585, 1.442695
      %v1589 = vpow.pop %v1588
      %v1590 = vadd.f32 %v1587, 1.0
      %v1591 = vadd.f32 %v1589, 1.0
      %v1592 = vrcp.pop %v1590
      %v1593 = vmul.f32 1.0, %v1592
      %v1594 = vrcp.pop %v1591
      %v1595 = vmul.f32 1.0, %v1594
      %v1596 = vtanh.pop %v1582
      %v1597 = vtanh.pop %v1583
      %v1598 = vmul.f32 %v1593, %v1507
      %v1599 = vmul.f32 %v1595, %v1508
      %1602 = vrot.lane.b32.xlu0 %v1596, 64
      %v1603 = vpop.permute.xlu0 %1602
      %1604 = vrot.lane.b32.xlu0 %v1597, 64
      %v1605 = vpop.permute.xlu0 %1604
      %v1608 = vmul.f32 %v1593, %v1603
      %v1609 = vmul.f32 %v1595, %v1605
      %1612 = vrot.lane.b32.xlu0 %v1608, 32
      %v1613 = vpop.permute.xlu0 %1612
      %1614 = vrot.lane.b32.xlu0 %v1609, 32
      %v1615 = vpop.permute.xlu0 %1614
      %v1618 = vadd.f32 %v1598, %v1613
      %v1619 = vadd.f32 %v1599, %v1615
      %v1620 = vtanh.pop %v1618
      %v1621 = vtanh.pop %v1619
      %1624 = vrot.lane.b32.xlu0 %v1620, 64
      %v1625 = vpop.permute.xlu0 %1624
      %1626 = vrot.lane.b32.xlu0 %v1621, 64
      %v1627 = vpop.permute.xlu0 %1626
      %v1630 = vmul.f32 %v1593, %v1625
      %v1631 = vmul.f32 %v1595, %v1627
      // Predicated region
      $region93: #{_forward_impl.1} parent=47 // pred_check
        %p1632 = pneg %p730
      $region94: #{_forward_impl.1} parent=47 // pred_check_branch
        %1634 = sbr.rel (%p1632) target = $region96
      $region95: #{_forward_impl.1} parent=47 // pred_region
        %v1635 = vpack.c.bf16 %v1631, %v1630
        %1637 = vrot.lane.b32.xlu0 %v1635, 32
        %v1638 = vpop.permute.xlu0 %1637
        %s1640 = scalar_lea.vmem [#allocation2], 56
        %1641 = vst.msk [vmem:[%s1640] sm:$0xff] %vm753, %v1638
      $region96: #{_forward_impl.1} parent=47 // pred_fallthru
        _
      %1644 = vrot.lane.b32.xlu0 %v1630, 32
      %v1645 = vpop.permute.xlu0 %1644
      %1646 = vrot.lane.b32.xlu0 %v1631, 32
      %v1647 = vpop.permute.xlu0 %1646
      %1650 = vst.msk [vmem:[%s732] sm:$0xff] %vm753, %v1645
      %1651 = vst.msk [vmem:[%s732 + $0x8] sm:$0xff] %vm753, %v1647
      %1654 = vrot.lane.b32.xlu0 %v1618, 96
      %v1655 = vpop.permute.xlu0 %1654
      %1656 = vrot.lane.b32.xlu0 %v1619, 96
      %v1657 = vpop.permute.xlu0 %1656
      %1660 = vst.msk [vmem:[%s735] sm:$0xff] %vm753, %v1655
      %1661 = vst.msk [vmem:[%s735 + $0x8] sm:$0xff] %vm753, %v1657
      %p1662 = scmp.eq.s32.totalorder %s23, 1
      %p1663 = pnand %p1662, %p282
      %p1664 = pneg %p1663
      // Predicated region
      $region97: #{_forward_impl.1} parent=47 // pred_check
        _
      $region98: #{_forward_impl.1} parent=47 // pred_check_branch
        %1666 = sbr.rel (%p1663) target = $region100
      $region99: #{_forward_impl.1} parent=47 // pred_region
        %v1667 = vpack.c.bf16 %v1631, %v1630
        %v1668 = vld [vmem:[%s5] sm:$0xf]
        %v1669 = vld [vmem:[%s5 + $0x4] sm:$0xf]
        %v1670 = vld [vmem:[%s5 + $0x8] sm:$0xf]
        %v1671 = vld [vmem:[%s5 + $0xc] sm:$0xf]
        %v1672 = vld [vmem:[%s6] sm:$0x1]
        %v1674 = vlaneseq
        %v1675 = vshrl.u32 %v1674, 7
        %v1676 = vsub.s32 0, %v1675
        %v1677 = vrot.slane %v1672, %v1676
        %1680 = vrot.lane.b32.xlu0 %v1667, 32
        %v1681 = vpop.permute.xlu0 %1680
        %v1686 = vunpack.c.l.b16 %v1668
        %v1687 = vunpack.c.l.b16 %v1669
        %v1688 = vunpack.c.l.b16 %v1670
        %v1689 = vunpack.c.l.b16 %v1671
        %v1690 = vpack.c.b16 %v1687, %v1686
        %v1691 = vpack.c.b16 %v1689, %v1688
        %v1695 = vsel %vm753, %v1681, 0
        %1697 = vmatprep.subr.bf16.mxu0 0
        %1698 = vmatpush1.bf16.msra.mxu0 %v1690
        %1699 = vmatprep.subr.bf16.mxu0 0
        %1700 = vmatpush1.bf16.msra.mxu0 %v1691
        %1701 = vmatprep.subr.bf16.mxu0 0
        %1702 = vmatpush1.bf16.msra.mxu0 0
        %1703 = vmatprep.subr.bf16.mxu0 0
        %1704 = vmatpush1.bf16.msra.mxu0 0
        %1705 = vmatprep.subr.bf16.mxu0 0
        %1706 = vmatpush1.bf16.msra.mxu0 0
        %1707 = vmatprep.subr.bf16.mxu0 0
        %1708 = vmatpush1.bf16.msra.mxu0 0
        %1709 = vmatprep.subr.bf16.mxu0 0
        %1710 = vmatpush1.bf16.msra.mxu0 0
        %1711 = vmatprep.subr.bf16.mxu0 0
        %1712 = vmatpush1.bf16.msra.mxu0 0
        %1713 = vmatprep.subr.bf16.mxu0 0
        %1714 = vmatpush1.bf16.msra.mxu0 0
        %1715 = vmatprep.subr.bf16.mxu0 0
        %1716 = vmatpush1.bf16.msra.mxu0 0
        %1717 = vmatprep.subr.bf16.mxu0 0
        %1718 = vmatpush1.bf16.msra.mxu0 0
        %1719 = vmatprep.subr.bf16.mxu0 0
        %1720 = vmatpush1.bf16.msra.mxu0 0
        %1721 = vmatprep.subr.bf16.mxu0 0
        %1722 = vmatpush1.bf16.msra.mxu0 0
        %1723 = vmatprep.subr.bf16.mxu0 0
        %1724 = vmatpush1.bf16.msra.mxu0 0
        %1725 = vmatprep.subr.bf16.mxu0 0
        %1726 = vmatpush1.bf16.msra.mxu0 0
        %1727 = vmatprep.subr.bf16.mxu0 0
        %1728 = vmatpush1.bf16.msra.mxu0 0
        %1729 = vmatprep.mubr.bf16.mxu0 0
        %1730 = vmatmul.mubr.bf16.gmra.mrb[0].mxu0 %v1695
        %v1731 = vpop.f32.mrb[0].mxu0
        %v1732 = vadd.f32 %v1677, %v1731
        %v1733 = vpop.f32.mrb[0].mxu0
        %v1734 = vpop.f32.mrb[0].mxu0
        %v1735 = vadd.f32 %v1677, %v1734
        %v1736 = vpop.f32.mrb[0].mxu0
        %1737 = vdwg.mxu0
        %1738 = vst [vmem:[%s7] sm:$0xff] %v1732
        %1739 = vst [vmem:[%s7 + $0x8] sm:$0xff] %v1735
      $region100: #{_forward_impl.1} parent=47 // pred_fallthru
        _
      // Predicated region
      $region101: #{_forward_impl.1} parent=47 // pred_check
        %p1740 = pneg %p195
      $region102: #{_forward_impl.1} parent=47 // pred_check_branch
        %1742 = sbr.rel (%p1740) target = $region104
      $region103: #{_forward_impl.1} parent=47 // pred_region
        _
      $region104: #{_forward_impl.1} parent=47 // pred_fallthru
        _
      // Predicated region
      $region105: #{_forward_impl.1} parent=47 // pred_check
        %p1743 = pneg %p195
      $region106: #{_forward_impl.1} parent=47 // pred_check_branch
        %1745 = sbr.rel (%p1743) target = $region108
      $region107: #{_forward_impl.1} parent=47 // pred_region
        _
      $region108: #{_forward_impl.1} parent=47 // pred_fallthru
        _
    $region48: #{_forward_impl.1} parent=5 // pred_fallthru
      _
    %p1746 = scmp.le.s32.totalorder 2, %s13
    // Predicated region
    $region109: #{_forward_impl.1} parent=5 // pred_check
      %p1747 = pneg %p1746
    $region110: #{_forward_impl.1} parent=5 // pred_check_branch
      %1749 = sbr.rel (%p1747) target = $region112
    $region111: #{_forward_impl.1} parent=5 // pred_region
      %s1750 = ssub.s32 %s13, 2
    $region112: #{_forward_impl.1} parent=5 // pred_fallthru
      _
  $region6: #{_forward_impl.1} parent=0 // loop_footer
    %s17 = sadd.s32 1, %s13
  $region7: #{_forward_impl.1} parent=0 // loop_footer_branch
    %12 = sbr.rel target = $region3
  $region8: #{_forward_impl.1} parent=0 // loop_exit
    _

</llo_original>
